<compile_context>
chip_gen: v7x
topology: tpu7x:2x2x1
jax: 0.10.0
libtpu: 0.0.40
codegen_flags: <defaults>
</compile_context>

<pallas_src>
import functools

import jax
import jax.numpy as jnp
from jax import lax
from jax.experimental import pallas as pl
from jax.experimental.pallas import tpu as pltpu


_BN_EPS = 1e-5


def _round_up(v, m):
    return -(-v // m) * m


def _pick_tile_l(length, c_out, pool):
    """Lane-dense L tile, sized so the f32 accumulator stays ~<=128 KiB."""
    gran = 256 if pool else 128            # pooled tile must still be >=128 lanes
    budget = ((1 << 17) // (c_out * 4)) // gran * gran
    budget = max(gran, min(budget, 512))
    needed = _round_up(length, gran)
    return min(budget, needed)


def _conv_block_kernel(x_ref, w_ref, scale_ref, shift_ref, o_ref, *,
                       dilation, groups, pack, relu, pool, conv_len):
    """Fused SAME conv1d + affine(BN) + ReLU + optional 2x max-pool for one
    (batch element, L-tile) grid point.

    pack=True : x_ref is the im2col'd tile (K*C_in, tile_L); single MXU dot.
    pack=False: x_ref is the full padded length (C_in, L_in); per-tap dots with
                windows read directly from the ref via pl.ds.
    """
    j = pl.program_id(1)
    c_out, tile_out = o_ref.shape
    tile = 2 * tile_out if pool else tile_out
    out_pg = c_out // groups

    if not pack:
        k_taps, _, c_in_pg = w_ref.shape
        base = pl.multiple_of(j * tile, 128)

    for g in range(groups):
        if pack:
            if groups == 1:
                acc = jnp.dot(w_ref[...], x_ref[...],
                              preferred_element_type=jnp.float32)
            else:
                acc = jnp.dot(w_ref[g * out_pg:(g + 1) * out_pg, :], x_ref[...],
                              preferred_element_type=jnp.float32)
        else:
            acc = jnp.zeros((out_pg, tile), jnp.float32)
            for k in range(k_taps):                       # static tap loop
                if groups == 1:
                    w_k = w_ref[k]                                      # (C_out, C_in)
                    x_k = x_ref[:, pl.ds(base + k * dilation, tile)]    # (C_in, tile)
                else:
                    w_k = w_ref[k, g * out_pg:(g + 1) * out_pg, :]
                    x_k = x_ref[g * c_in_pg:(g + 1) * c_in_pg,
                                pl.ds(base + k * dilation, tile)]
                acc = acc + jnp.dot(w_k, x_k, preferred_element_type=jnp.float32)

        # Folded BatchNorm affine (+ conv bias), then ReLU.
        res = (acc * scale_ref[g * out_pg:(g + 1) * out_pg, :]
               + shift_ref[g * out_pg:(g + 1) * out_pg, :])
        if relu:
            res = jnp.maximum(res, 0.0)

        if pool:
            # Zero columns beyond the true conv length (PyTorch pads the SAME
            # max-pool with zeros; values are >=0 after ReLU so this is exact).
            pos = j * tile + lax.broadcasted_iota(jnp.int32, (1, tile), 1)
            res = jnp.where(pos < conv_len, res, 0.0)
            # Even/odd selection via 0/1 matrices on the MXU (no strided lanes).
            half = tile // 2
            r = lax.broadcasted_iota(jnp.int32, (tile, half), 0)
            c = lax.broadcasted_iota(jnp.int32, (tile, half), 1)
            sel_e = (r == 2 * c).astype(jnp.float32)
            sel_o = (r == 2 * c + 1).astype(jnp.float32)
            res = jnp.maximum(
                jnp.dot(res, sel_e, preferred_element_type=jnp.float32),
                jnp.dot(res, sel_o, preferred_element_type=jnp.float32))

        if groups == 1:
            o_ref[...] = res.astype(o_ref.dtype)
        else:
            o_ref[g * out_pg:(g + 1) * out_pg, :] = res.astype(o_ref.dtype)


def conv1d_same_block(x, w, scale, shift, *, stride=1, dilation=1, groups=1,
                      relu=True, pool=False):
    """Fused MyConv1dPadSame + inference BatchNorm (as per-channel scale/shift,
    conv bias folded in) + ReLU + optional MyMaxPool1dPadSame(kernel=2, stride=2).

    x: (B, C_in, L);  w: (C_out, C_in//groups, K) (PyTorch layout)
    scale/shift: (C_out,)
    """
    assert stride == 1, "Conv1d(padding='same') requires stride == 1"
    B, C_in, L = x.shape
    C_out, C_in_pg, K = w.shape
    assert C_in_pg * groups == C_in and C_out % groups == 0

    halo = dilation * (K - 1)
    left = halo // 2                        # PyTorch 'same': extra pad on the right

    tile = _pick_tile_l(L, C_out, pool)
    n_tiles = -(-L // tile)
    l_padded = n_tiles * tile               # padded conv-output length (mult of 128)
    l_in = _round_up(l_padded + halo, 128)  # lane-aligned padded input length

    x_pad = jnp.pad(x, ((0, 0), (0, 0), (left, l_in - L - left)))
    scale2 = scale.reshape(C_out, 1).astype(jnp.float32)
    shift2 = shift.reshape(C_out, 1).astype(jnp.float32)

    # Fold taps into the contraction when C_in alone would under-fill the MXU.
    pack = (groups == 1) and (C_in_pg < 128)

    if pack:
        # Wrapper-side im2col over taps: row index = k*C_in + ci.
        x_in = jnp.stack(
            [x_pad[:, :, k * dilation:k * dilation + l_padded] for k in range(K)],
            axis=1).reshape(B, K * C_in, l_padded)
        w_in = jnp.transpose(w, (0, 2, 1)).reshape(C_out, K * C_in)
        x_spec = pl.BlockSpec((None, K * C_in, tile), lambda b, j: (b, 0, j))
        w_spec = pl.BlockSpec((C_out, K * C_in), lambda b, j: (0, 0))
        x_block_elems = K * C_in * tile
    else:
        # Taps on the leading axis, channels on sublanes/lanes (dense weight DMA).
        x_in = x_pad
        w_in = jnp.transpose(w, (2, 0, 1))                  # (K, C_out, C_in_pg)
        x_spec = pl.BlockSpec((None, C_in, l_in), lambda b, j: (b, 0, 0))
        w_spec = pl.BlockSpec((K, C_out, C_in_pg), lambda b, j: (0, 0, 0))
        x_block_elems = C_in * l_in

    tile_out = tile // 2 if pool else tile
    out_len = l_padded // 2 if pool else l_padded
    vec_spec = pl.BlockSpec((C_out, 1), lambda b, j: (0, 0))
    o_spec = pl.BlockSpec((None, C_out, tile_out), lambda b, j: (b, 0, j))

    # VMEM budget: double-buffered x / w / out blocks + margin for accumulator
    # and pooling temporaries.  Capped below v7x's 64 MiB per-core VMEM.
    est = 4 * (2 * x_block_elems + 2 * int(w_in.size) + 2 * C_out * tile_out
               + 4 * C_out)
    vmem_limit = int(min(max(est + (8 << 20), 16 << 20), 56 << 20))

    kernel = functools.partial(
        _conv_block_kernel, dilation=dilation, groups=groups, pack=pack,
        relu=relu, pool=pool, conv_len=L)

    out = pl.pallas_call(
        kernel,
        out_shape=jax.ShapeDtypeStruct((B, C_out, out_len), x.dtype),
        grid=(B, n_tiles),
        in_specs=[x_spec, w_spec, vec_spec, vec_spec],
        out_specs=o_spec,
        compiler_params=pltpu.CompilerParams(
            dimension_semantics=("parallel", "parallel"),
            vmem_limit_bytes=vmem_limit),
    )(x_in, w_in, scale2, shift2)

    l_final = -(-L // 2) if pool else L
    return out[:, :, :l_final]


def _mean_dense_kernel(x_ref, w_ref, b_ref, o_ref):
    feat = jnp.mean(x_ref[...], axis=-1)                    # (B, C)
    o_ref[...] = (jnp.dot(feat, w_ref[...], preferred_element_type=jnp.float32)
                  + b_ref[...]).astype(o_ref.dtype)


def mean_dense(x, w, b):
    """torch.mean(x, dim=-1) followed by nn.Linear(C, n_classes)."""
    B, C, L = x.shape
    n_cls = w.shape[0]
    return pl.pallas_call(
        _mean_dense_kernel,
        out_shape=jax.ShapeDtypeStruct((B, n_cls), x.dtype),
        grid=(1,),
        in_specs=[pl.BlockSpec((B, C, L), lambda i: (0, 0, 0)),
                  pl.BlockSpec((C, n_cls), lambda i: (0, 0)),
                  pl.BlockSpec((1, n_cls), lambda i: (0, 0))],
        out_specs=pl.BlockSpec((B, n_cls), lambda i: (0, 0)),
    )(x, jnp.transpose(w), b.reshape(1, n_cls))


def deepnet_forward(x, block_params, dense_w, dense_b):
    out = x
    for p in block_params:
        scale = p["gamma"] / jnp.sqrt(p["var"] + _BN_EPS)
        shift = p["beta"] - p["mean"] * scale + p["b"] * scale   # conv bias folded in
        out = conv1d_same_block(out, p["w"], scale, shift,
                                dilation=p["dilation"], relu=True, pool=p["pool"])
        # TODO(synk): nn.Dropout(p=0.3) is the identity in inference mode; the
        # training-mode stochastic mask is not implemented here.
    return mean_dense(out, dense_w, dense_b)


# ---------------------------- pure-JAX reference ----------------------------

def _ref_forward(x, block_params, dense_w, dense_b):
    out = x
    for p in block_params:
        k = p["w"].shape[-1]
        total = p["dilation"] * (k - 1)
        left = total // 2
        y = lax.conv_general_dilated(
            out, p["w"], window_strides=(1,), padding=[(left, total - left)],
            rhs_dilation=(p["dilation"],),
            dimension_numbers=("NCH", "OIH", "NCH"),
            precision=lax.Precision.HIGHEST) + p["b"][None, :, None]
        y = (y - p["mean"][None, :, None]) / jnp.sqrt(p["var"] + _BN_EPS)[None, :, None]
        y = y * p["gamma"][None, :, None] + p["beta"][None, :, None]
        y = jnp.maximum(y, 0.0)
        if p["pool"]:
            L = y.shape[-1]
            out_dim = -(-L // 2)
            pad = max(0, (out_dim - 1) * 2 + 2 - L)
            y = jnp.pad(y, ((0, 0), (0, 0), (pad // 2, pad - pad // 2)))
            y = jnp.maximum(y[..., 0::2], y[..., 1::2])
        out = y
    feat = jnp.mean(out, axis=-1)
    return jnp.dot(feat, dense_w.T, precision=lax.Precision.HIGHEST) + dense_b[None, :]


if __name__ == "__main__":
    key = jax.random.PRNGKey(0)
    batch, length, n_classes = 2, 512, 5

    # DeepNet architecture: (in_ch, out_ch, kernel_size, dilation, use_maxpool)
    arch = [(1, 320, 24, 1, True),
            (320, 256, 16, 4, False),
            (256, 256, 16, 4, False),
            (256, 256, 16, 4, False),
            (256, 128, 8, 4, True),
            (128, 128, 8, 6, False),
            (128, 128, 8, 6, False),
            (128, 128, 8, 6, False),
            (128, 128, 8, 6, False),
            (128, 128, 8, 8, True),
            (128, 64, 8, 8, False),
            (64, 64, 8, 8, False)]

    blocks = []
    for (ci, co, k, d, mp) in arch:
        key, kw, kb, kg, kbe, km, kv = jax.random.split(key, 7)
        bound = (6.0 / (ci * k)) ** 0.5      # He-uniform keeps activations O(1)
        blocks.append(dict(
            w=jax.random.uniform(kw, (co, ci, k), jnp.float32, -bound, bound),
            b=jax.random.uniform(kb, (co,), jnp.float32, -0.1, 0.1),
            gamma=jax.random.uniform(kg, (co,), jnp.float32, 0.9, 1.1),
            beta=jax.random.uniform(kbe, (co,), jnp.float32, -0.1, 0.1),
            mean=jax.random.uniform(km, (co,), jnp.float32, -0.1, 0.1),
            var=jax.random.uniform(kv, (co,), jnp.float32, 0.8, 1.2),
            dilation=d, pool=mp))

    key, kd, kdb, kx = jax.random.split(key, 4)
    dense_w = jax.random.uniform(kd, (n_classes, 64), jnp.float32, -0.125, 0.125)
    dense_b = jax.random.uniform(kdb, (n_classes,), jnp.float32, -0.125, 0.125)
    x = jax.random.normal(kx, (batch, 1, length), jnp.float32)

    out = jax.block_until_ready(deepnet_forward(x, blocks, dense_w, dense_b))
    assert out.shape == (batch, n_classes)
    assert bool(jnp.all(jnp.isfinite(out)))

    ref = _ref_forward(x, blocks, dense_w, dense_b)
    assert jnp.allclose(out, ref, atol=2e-2, rtol=2e-2), (out, ref)
    print("KERNEL_OK")
</pallas_src>

<mosaic_0001>
module attributes {stable_mosaic.version = 11 : i64} {
  func.func @_conv_block_kernel(%arg0: i32, %arg1: i32, %arg2: memref<1x24x256xf32, #tpu.memory_space<vmem>>, %arg3: memref<320x24xf32, #tpu.memory_space<vmem>>, %arg4: memref<320x1xf32, #tpu.memory_space<vmem>>, %arg5: memref<320x1xf32, #tpu.memory_space<vmem>>, %arg6: memref<1x320x128xf32, #tpu.memory_space<vmem>>) attributes {dimension_semantics = [#tpu.dimension_semantics<parallel>, #tpu.dimension_semantics<parallel>], iteration_bounds = array<i64: 2, 2>, scalar_prefetch = 0 : i64, scratch_operands = 0 : i64, tpu.core_type = #tpu.core_type<tc>, window_params = [{transform_indices = @transform_0, window_bounds = array<i64: 1, 24, 256>}, {pipeline_mode = #tpu.pipeline_mode<synchronous>, transform_indices = @transform_1, window_bounds = array<i64: 320, 24>}, {pipeline_mode = #tpu.pipeline_mode<synchronous>, transform_indices = @transform_2, window_bounds = array<i64: 320, 1>}, {pipeline_mode = #tpu.pipeline_mode<synchronous>, transform_indices = @transform_3, window_bounds = array<i64: 320, 1>}, {transform_indices = @transform_4, window_bounds = array<i64: 1, 320, 128>}]} {
    %c0 = arith.constant 0 : index
    %c0_0 = arith.constant 0 : index
    %0 = vector.load %arg3[%c0, %c0_0] : memref<320x24xf32, #tpu.memory_space<vmem>>, vector<320x24xf32>
    %c0_1 = arith.constant 0 : index
    %c0_2 = arith.constant 0 : index
    %c0_3 = arith.constant 0 : index
    %1 = vector.load %arg2[%c0_1, %c0_2, %c0_3] : memref<1x24x256xf32, #tpu.memory_space<vmem>>, vector<1x24x256xf32>
    %2 = vector.shape_cast %1 : vector<1x24x256xf32> to vector<24x256xf32>
    %cst = arith.constant dense<0.000000e+00> : vector<320x256xf32>
    %3 = tpu.matmul %0, %2, %cst {dimension_numbers = #tpu.dot_dimension_numbers<[1], [0], [0], [1], [0, 0, 1, 1], [], []>} : vector<320x24xf32>, vector<24x256xf32>, vector<320x256xf32> -> vector<320x256xf32>
    %c0_4 = arith.constant 0 : index
    %c0_5 = arith.constant 0 : index
    %4 = vector.load %arg4[%c0_4, %c0_5] : memref<320x1xf32, #tpu.memory_space<vmem>>, vector<320x1xf32>
    %5 = vector.broadcast %4 : vector<320x1xf32> to vector<320x256xf32>
    %6 = arith.mulf %3, %5 : vector<320x256xf32>
    %c0_6 = arith.constant 0 : index
    %c0_7 = arith.constant 0 : index
    %7 = vector.load %arg5[%c0_6, %c0_7] : memref<320x1xf32, #tpu.memory_space<vmem>>, vector<320x1xf32>
    %8 = vector.broadcast %7 : vector<320x1xf32> to vector<320x256xf32>
    %9 = arith.addf %6, %8 : vector<320x256xf32>
    %cst_8 = arith.constant 0.000000e+00 : f32
    %10 = vector.broadcast %cst_8 : f32 to vector<320x256xf32>
    %11 = arith.maximumf %9, %10 : vector<320x256xf32>
    %c256_i32 = arith.constant 256 : i32
    %12 = arith.muli %arg1, %c256_i32 : i32
    %13 = tpu.iota {dimensions = array<i32: 1>} : vector<1x256xi32>
    %14 = vector.broadcast %12 : i32 to vector<1x256xi32>
    %15 = arith.addi %14, %13 : vector<1x256xi32>
    %c512_i32 = arith.constant 512 : i32
    %16 = vector.broadcast %c512_i32 : i32 to vector<1x256xi32>
    %17 = arith.cmpi slt, %15, %16 : vector<1x256xi32>
    %cst_9 = arith.constant 0.000000e+00 : f32
    %18 = vector.shape_cast %17 : vector<1x256xi1> to vector<1x256xi1>
    %19 = vector.broadcast %18 : vector<1x256xi1> to vector<320x256xi1>
    %20 = vector.broadcast %cst_9 : f32 to vector<320x256xf32>
    %21 = arith.select %19, %11, %20 : vector<320x256xi1>, vector<320x256xf32>
    %22 = tpu.iota {dimensions = array<i32: 0>} : vector<256x128xi32>
    %23 = tpu.iota {dimensions = array<i32: 1>} : vector<256x128xi32>
    %c2_i32 = arith.constant 2 : i32
    %24 = vector.broadcast %c2_i32 : i32 to vector<256x128xi32>
    %25 = arith.muli %24, %23 : vector<256x128xi32>
    %26 = arith.cmpi eq, %22, %25 : vector<256x128xi32>
    %27 = arith.extui %26 : vector<256x128xi1> to vector<256x128xi32>
    %28 = arith.sitofp %27 : vector<256x128xi32> to vector<256x128xf32>
    %c2_i32_10 = arith.constant 2 : i32
    %29 = vector.broadcast %c2_i32_10 : i32 to vector<256x128xi32>
    %30 = arith.muli %29, %23 : vector<256x128xi32>
    %c1_i32 = arith.constant 1 : i32
    %31 = vector.broadcast %c1_i32 : i32 to vector<256x128xi32>
    %32 = arith.addi %30, %31 : vector<256x128xi32>
    %33 = arith.cmpi eq, %22, %32 : vector<256x128xi32>
    %34 = arith.extui %33 : vector<256x128xi1> to vector<256x128xi32>
    %35 = arith.sitofp %34 : vector<256x128xi32> to vector<256x128xf32>
    %cst_11 = arith.constant dense<0.000000e+00> : vector<320x128xf32>
    %36 = tpu.matmul %21, %28, %cst_11 {dimension_numbers = #tpu.dot_dimension_numbers<[1], [0], [0], [1], [0, 0, 1, 1], [], []>} : vector<320x256xf32>, vector<256x128xf32>, vector<320x128xf32> -> vector<320x128xf32>
    %cst_12 = arith.constant dense<0.000000e+00> : vector<320x128xf32>
    %37 = tpu.matmul %21, %35, %cst_12 {dimension_numbers = #tpu.dot_dimension_numbers<[1], [0], [0], [1], [0, 0, 1, 1], [], []>} : vector<320x256xf32>, vector<256x128xf32>, vector<320x128xf32> -> vector<320x128xf32>
    %38 = arith.maximumf %36, %37 : vector<320x128xf32>
    %c0_13 = arith.constant 0 : index
    %c0_14 = arith.constant 0 : index
    %c0_15 = arith.constant 0 : index
    %39 = vector.load %arg6[%c0_13, %c0_14, %c0_15] : memref<1x320x128xf32, #tpu.memory_space<vmem>>, vector<1x320x128xf32>
    %40 = vector.shape_cast %39 : vector<1x320x128xf32> to vector<320x128xf32>
    %41 = vector.shape_cast %38 : vector<320x128xf32> to vector<1x320x128xf32>
    tpu.vector_store %arg6[%c0_13, %c0_14, %c0_15], %41 {strides = array<i32>} : memref<1x320x128xf32, #tpu.memory_space<vmem>>, vector<1x320x128xf32>,
    return
  }
  func.func @transform_0(%arg0: i32, %arg1: i32) -> (i32, i32, i32) {
    %c0_i32 = arith.constant 0 : i32
    %c0_i32_0 = arith.constant 0 : i32
    return %arg0, %c0_i32, %arg1 : i32, i32, i32
  }
  func.func @transform_1(%arg0: i32, %arg1: i32) -> (i32, i32) {
    %c0_i32 = arith.constant 0 : i32
    %c0_i32_0 = arith.constant 0 : i32
    %c0_i32_1 = arith.constant 0 : i32
    return %c0_i32, %c0_i32_0 : i32, i32
  }
  func.func @transform_2(%arg0: i32, %arg1: i32) -> (i32, i32) {
    %c0_i32 = arith.constant 0 : i32
    %c0_i32_0 = arith.constant 0 : i32
    %c0_i32_1 = arith.constant 0 : i32
    return %c0_i32, %c0_i32_0 : i32, i32
  }
  func.func @transform_3(%arg0: i32, %arg1: i32) -> (i32, i32) {
    %c0_i32 = arith.constant 0 : i32
    %c0_i32_0 = arith.constant 0 : i32
    %c0_i32_1 = arith.constant 0 : i32
    return %c0_i32, %c0_i32_0 : i32, i32
  }
  func.func @transform_4(%arg0: i32, %arg1: i32) -> (i32, i32, i32) {
    %c0_i32 = arith.constant 0 : i32
    %c0_i32_0 = arith.constant 0 : i32
    return %arg0, %c0_i32, %arg1 : i32, i32, i32
  }
}

</mosaic_0001>

<llo_original>
// kernel: tpu_custom_call.1
$region0: #{tpu_custom_call.1}
  #allocation0 [shape = 'u32[]', space=smem, size = 0x4, offset = 0x4, fixed_abs, tag = 'smem constant byte address 0x4 - core index']
  #allocation1 [shape = 'u32[144,128]{1,0:T(1,128)}', space=vmem, size = 0x12000, scoped, tag = 'internal scratch']
  %s0 = inlined_call_operand.vmem [shape: f32[2,24,512], index: 0, kind: input, shape index: {}]
  %s1 = inlined_call_operand.vmem [shape: f32[320,24], index: 1, kind: input, shape index: {}]
  %s2 = inlined_call_operand.vmem [shape: f32[320,1], index: 2, kind: input, shape index: {}]
  %s3 = inlined_call_operand.vmem [shape: f32[320,1], index: 3, kind: input, shape index: {}]
  %s4 = inlined_call_operand.hbm [shape: f32[2,320,256], index: 4, kind: output, shape index: {}]
  %s5 = sld [smem:[#allocation0]]
  $region72: #{tpu_custom_call.1} parent=0
    _
  %s7 = ssub.s32 1, %s5
  %s8 = scalar_select 0, %s7, %s5
  $region1: #{tpu_custom_call.1} parent=0
    #allocation2 [shape = 'u8[49152]{0}', space=vmem, size = 0xc000, scoped, tag = 'input window, operand 0']
    #allocation3 [shape = 'u8[327680]{0}', space=vmem, size = 0x50000, scoped, tag = 'output window, operand 0']
    #allocation4 [shape = 's32[2]{0}', space=sflag, size = 0x8, scoped, tag = 'scoped memory for tpu_custom_call.1']
    %9 = vsyncpa [#allocation4], 0
    %s10 = scalar_lea.sflag [#allocation4], 1
    %11 = vsyncpa %s10, 0
    loop: start=0, step=1, limit=6
    $region2: #{tpu_custom_call.1} parent=1 // loop_pre_header
      _
    $region3: #{tpu_custom_call.1} parent=1 // loop_header
      %s13 = sphi 0, %s17
      %p14 = scmp.ge.s32.totalorder %s13, 6
      %s20 = sphi 0, %s32
      %s21 = sphi 0, %s28
      %s22 = sphi 0, %s20
      %s23 = sphi 0, %s21
      %s24 = sphi 0, %s22
      %s25 = sphi 0, %s23
      %s37 = sphi 0, %s39
      %s40 = sphi 0, %s37
      %s41 = sphi 0, %s40
      %s57 = sphi 0, %s41
      %s61 = sphi 0, %s61
      %s63 = sphi 0, %s61
      %s64 = sphi 0, %s63
      %s78 = sphi 0, %s64
      %s82 = sphi 0, %s82
      %s84 = sphi 0, %s82
      %s85 = sphi 0, %s84
      %s99 = sphi 0, %s85
      %s103 = sphi 0, %s103
      %s105 = sphi 0, %s103
      %s106 = sphi 0, %s105
      %s120 = sphi 0, %s106
      %s128 = sphi 0, %s130
      %s131 = sphi 0, %s128
      %s132 = sphi 0, %s131
      %s148 = sphi 0, %s132
    $region4: #{tpu_custom_call.1} parent=1 // loop_header_branch
      %16 = sbr.rel (%p14) target = $region8
    $region5: #{tpu_custom_call.1} parent=1 // loop_body
      %s18 = ssub.s32 %s13, 1
      %s19 = ssub.s32 %s13, 2
      %s26 = sadd.s32 1, %s21
      %p27 = scmp.ge.s32.totalorder %s26, 2
      %s28 = scalar_select %p27, 0, %s26
      %s29 = sadd.s32 1, %s20
      %s30 = scalar_select %p27, %s29, %s20
      %p31 = scmp.ge.s32.totalorder %s30, 2
      %s32 = scalar_select %p31, 0, %s30
      %s33 = ssub.s32 %s20, %s32
      %s34 = ssub.s32 %s21, %s28
      %s35 = sor.u32 %s33, %s34
      %p36 = scmp.eq.s32.totalorder %s35, 0
      %s38 = sadd.s32 %s37, 1
      %s39 = scalar_select %p36, %s37, %s38
      %p42 = pneg %p36
      %p43 = scmp.eq.s32.totalorder %s13, 3
      %p44 = por %p42, %p43
      %p45 = scmp.ne.s32.totalorder %s37, %s40
      %p46 = scmp.eq.s32.totalorder %s13, 0
      %p47 = por %p45, %p46
      %p48 = scmp.ne.s32.totalorder %s37, %s40
      %p49 = scmp.eq.s32.totalorder %s18, 3
      %p50 = por %p48, %p49
      %p51 = scmp.ne.s32.totalorder %s40, %s41
      %p52 = scmp.eq.s32.totalorder %s18, 0
      %p53 = por %p51, %p52
      %p54 = scmp.ne.s32.totalorder %s40, %s41
      %p55 = scmp.eq.s32.totalorder %s19, 3
      %p56 = por %p54, %p55
      %p58 = scmp.ne.s32.totalorder %s41, %s57
      %p59 = scmp.eq.s32.totalorder %s19, 0
      %p60 = por %p58, %p59
      %s62 = sadd.s32 %s61, 1
      %p65 = scmp.eq.s32.totalorder %s13, 3
      %p66 = scmp.ne.s32.totalorder %s61, %s63
      %p67 = scmp.eq.s32.totalorder %s13, 0
      %p68 = por %p66, %p67
      %p69 = scmp.ne.s32.totalorder %s61, %s63
      %p70 = scmp.eq.s32.totalorder %s18, 3
      %p71 = por %p69, %p70
      %p72 = scmp.ne.s32.totalorder %s63, %s64
      %p73 = scmp.eq.s32.totalorder %s18, 0
      %p74 = por %p72, %p73
      %p75 = scmp.ne.s32.totalorder %s63, %s64
      %p76 = scmp.eq.s32.totalorder %s19, 3
      %p77 = por %p75, %p76
      %p79 = scmp.ne.s32.totalorder %s64, %s78
      %p80 = scmp.eq.s32.totalorder %s19, 0
      %p81 = por %p79, %p80
      %s83 = sadd.s32 %s82, 1
      %p86 = scmp.eq.s32.totalorder %s13, 3
      %p87 = scmp.ne.s32.totalorder %s82, %s84
      %p88 = scmp.eq.s32.totalorder %s13, 0
      %p89 = por %p87, %p88
      %p90 = scmp.ne.s32.totalorder %s82, %s84
      %p91 = scmp.eq.s32.totalorder %s18, 3
      %p92 = por %p90, %p91
      %p93 = scmp.ne.s32.totalorder %s84, %s85
      %p94 = scmp.eq.s32.totalorder %s18, 0
      %p95 = por %p93, %p94
      %p96 = scmp.ne.s32.totalorder %s84, %s85
      %p97 = scmp.eq.s32.totalorder %s19, 3
      %p98 = por %p96, %p97
      %p100 = scmp.ne.s32.totalorder %s85, %s99
      %p101 = scmp.eq.s32.totalorder %s19, 0
      %p102 = por %p100, %p101
      %s104 = sadd.s32 %s103, 1
      %p107 = scmp.eq.s32.totalorder %s13, 3
      %p108 = scmp.ne.s32.totalorder %s103, %s105
      %p109 = scmp.eq.s32.totalorder %s13, 0
      %p110 = por %p108, %p109
      %p111 = scmp.ne.s32.totalorder %s103, %s105
      %p112 = scmp.eq.s32.totalorder %s18, 3
      %p113 = por %p111, %p112
      %p114 = scmp.ne.s32.totalorder %s105, %s106
      %p115 = scmp.eq.s32.totalorder %s18, 0
      %p116 = por %p114, %p115
      %p117 = scmp.ne.s32.totalorder %s105, %s106
      %p118 = scmp.eq.s32.totalorder %s19, 3
      %p119 = por %p117, %p118
      %p121 = scmp.ne.s32.totalorder %s106, %s120
      %p122 = scmp.eq.s32.totalorder %s19, 0
      %p123 = por %p121, %p122
      %s124 = ssub.s32 %s20, %s32
      %s125 = ssub.s32 %s21, %s28
      %s126 = sor.u32 %s124, %s125
      %p127 = scmp.eq.s32.totalorder %s126, 0
      %s129 = sadd.s32 %s128, 1
      %s130 = scalar_select %p127, %s128, %s129
      %p133 = pneg %p127
      %p134 = scmp.eq.s32.totalorder %s13, 3
      %p135 = por %p133, %p134
      %p136 = scmp.ne.s32.totalorder %s128, %s131
      %p137 = scmp.eq.s32.totalorder %s13, 0
      %p138 = por %p136, %p137
      %p139 = scmp.ne.s32.totalorder %s128, %s131
      %p140 = scmp.eq.s32.totalorder %s18, 3
      %p141 = por %p139, %p140
      %p142 = scmp.ne.s32.totalorder %s131, %s132
      %p143 = scmp.eq.s32.totalorder %s18, 0
      %p144 = por %p142, %p143
      %p145 = scmp.ne.s32.totalorder %s131, %s132
      %p146 = scmp.eq.s32.totalorder %s19, 3
      %p147 = por %p145, %p146
      %p149 = scmp.ne.s32.totalorder %s132, %s148
      %p150 = scmp.eq.s32.totalorder %s19, 0
      %p151 = por %p149, %p150
      %p152 = scmp.le.s32.totalorder 1, %s13
      %p153 = scmp.lt.s32.totalorder %s13, 5
      %p154 = pnand %p152, %p153
      %p155 = pneg %p154
      // Predicated region
      $region9: #{tpu_custom_call.1} parent=5 // pred_check
        _
      $region10: #{tpu_custom_call.1} parent=5 // pred_check_branch
        %157 = sbr.rel (%p154) target = $region12
      $region11: #{tpu_custom_call.1} parent=5 // pred_region
        %s158 = ssub.s32 %s13, 1
        // Predicated region
        $region13: #{tpu_custom_call.1} parent=11 // pred_check
          %p159 = pneg %p74
        $region14: #{tpu_custom_call.1} parent=11 // pred_check_branch
          %161 = sbr.rel (%p159) target = $region16
        $region15: #{tpu_custom_call.1} parent=11 // pred_region
          _
        $region16: #{tpu_custom_call.1} parent=11 // pred_fallthru
          _
        // Predicated region
        $region17: #{tpu_custom_call.1} parent=11 // pred_check
          %p162 = pneg %p95
        $region18: #{tpu_custom_call.1} parent=11 // pred_check_branch
          %164 = sbr.rel (%p162) target = $region20
        $region19: #{tpu_custom_call.1} parent=11 // pred_region
          _
        $region20: #{tpu_custom_call.1} parent=11 // pred_fallthru
          _
        // Predicated region
        $region21: #{tpu_custom_call.1} parent=11 // pred_check
          %p165 = pneg %p116
        $region22: #{tpu_custom_call.1} parent=11 // pred_check_branch
          %167 = sbr.rel (%p165) target = $region24
        $region23: #{tpu_custom_call.1} parent=11 // pred_region
          _
        $region24: #{tpu_custom_call.1} parent=11 // pred_fallthru
          _
      $region12: #{tpu_custom_call.1} parent=5 // pred_fallthru
        _
      %p168 = scmp.lt.s32.totalorder %s13, 4
      // Predicated region
      $region25: #{tpu_custom_call.1} parent=5 // pred_check
        %p169 = pneg %p168
      $region26: #{tpu_custom_call.1} parent=5 // pred_check_branch
        %171 = sbr.rel (%p169) target = $region28
      $region27: #{tpu_custom_call.1} parent=5 // pred_region
        // Predicated region
        $region29: #{tpu_custom_call.1} parent=27 // pred_check
          %p172 = pneg %p47
        $region30: #{tpu_custom_call.1} parent=27 // pred_check_branch
          %174 = sbr.rel (%p172) target = $region32
        $region31: #{tpu_custom_call.1} parent=27 // pred_region
          %s175 = sand.u32 %s37, 1
          %s176 = sand.u32 %s37, 1
          %s177 = smul.addr %s176, 48
          %s178 = scalar_lea.vmem [#allocation2], %s177
          %s179 = smul.u32 2, %s21
          %s180 = smul.addr %s20, 12
          %s181 = sadd.s32 %s179, %s180
          %s182 = smul.addr %s181, 8
          %s183 = scalar_lea.vmem %s0, %s182
          // Predicated region
          $region33: #{tpu_custom_call.1} parent=31 // pred_check
            _
          $region34: #{tpu_custom_call.1} parent=31 // pred_check_branch
            %185 = sbr.rel (0) target = $region36
          $region35: #{tpu_custom_call.1} parent=31 // pred_region
            // Predicated region
            $region37: #{tpu_custom_call.1} parent=35 // pred_check
              _
            $region38: #{tpu_custom_call.1} parent=35 // pred_check_branch
              %187 = sbr.rel (0) target = $region40
            $region39: #{tpu_custom_call.1} parent=35 // pred_region
              loop: start=0, step=1, limit=1
              $region41: #{tpu_custom_call.1} parent=39 // loop_pre_header
                _
              $region42: #{tpu_custom_call.1} parent=39 // loop_header
                %s189 = sphi 0, %s193
                %p190 = scmp.ge.s32.totalorder %s189, 1
                %s194 = sphi %s183, %s183
                %s195 = sphi %s178, %s178
              $region43: #{tpu_custom_call.1} parent=39 // loop_header_branch
                %192 = sbr.rel (%p190) target = $region47
              $region44: #{tpu_custom_call.1} parent=39 // loop_body
                %v196 = vld [vmem:[%s194] sm:$0xff]
                %197 = vst [vmem:[%s195] sm:$0xff] %v196
                %v198 = vld [vmem:[%s194 + $0x8] sm:$0xff]
                %199 = vst [vmem:[%s195 + $0x8] sm:$0xff] %v198
                %v200 = vld [vmem:[%s194 + $0x20] sm:$0xff]
                %201 = vst [vmem:[%s195 + $0x10] sm:$0xff] %v200
                %v202 = vld [vmem:[%s194 + $0x28] sm:$0xff]
                %203 = vst [vmem:[%s195 + $0x18] sm:$0xff] %v202
                %v204 = vld [vmem:[%s194 + $0x40] sm:$0xff]
                %205 = vst [vmem:[%s195 + $0x20] sm:$0xff] %v204
                %v206 = vld [vmem:[%s194 + $0x48] sm:$0xff]
                %207 = vst [vmem:[%s195 + $0x28] sm:$0xff] %v206
              $region45: #{tpu_custom_call.1} parent=39 // loop_footer
                %s193 = sadd.s32 1, %s189
              $region46: #{tpu_custom_call.1} parent=39 // loop_footer_branch
                %188 = sbr.rel target = $region42
              $region47: #{tpu_custom_call.1} parent=39 // loop_exit
                _
            $region40: #{tpu_custom_call.1} parent=35 // pred_fallthru
              _
            // Predicated region
            $region48: #{tpu_custom_call.1} parent=35 // pred_check
              _
            $region49: #{tpu_custom_call.1} parent=35 // pred_check_branch
              %209 = sbr.rel target = $region51
            $region50: #{tpu_custom_call.1} parent=35 // pred_region
              _
            $region51: #{tpu_custom_call.1} parent=35 // pred_fallthru
              _
          $region36: #{tpu_custom_call.1} parent=31 // pred_fallthru
            _
          %210 = vnop
        $region32: #{tpu_custom_call.1} parent=27 // pred_fallthru
          _
      $region28: #{tpu_custom_call.1} parent=5 // pred_fallthru
        _
      %p211 = scmp.le.s32.totalorder 1, %s13
      %p212 = scmp.lt.s32.totalorder %s13, 5
      %p213 = pnand %p211, %p212
      %p214 = pneg %p213
      // Predicated region
      $region52: #{tpu_custom_call.1} parent=5 // pred_check
        _
      $region53: #{tpu_custom_call.1} parent=5 // pred_check_branch
        %216 = sbr.rel (%p213) target = $region55
      $region54: #{tpu_custom_call.1} parent=5 // pred_region
        %s217 = ssub.s32 %s13, 1
        %s218 = sand.u32 %s40, 1
        %s219 = sand.u32 %s40, 1
        %s220 = smul.addr %s219, 48
        %s221 = scalar_lea.vmem [#allocation2], %s220
        // Predicated region
        $region56: #{tpu_custom_call.1} parent=54 // pred_check
          %p222 = pneg %p53
        $region57: #{tpu_custom_call.1} parent=54 // pred_check_branch
          %224 = sbr.rel (%p222) target = $region59
        $region58: #{tpu_custom_call.1} parent=54 // pred_region
          _
        $region59: #{tpu_custom_call.1} parent=54 // pred_fallthru
          _
        %s225 = sand.u32 %s40, 1
        %s226 = sand.u32 %s40, 1
        %s227 = smul.addr %s226, 48
        %s228 = scalar_lea.vmem [#allocation2], %s227
        %p229 = pneg %p53
        %p230 = pneg %p50
        %p231 = pneg %p74
        %p232 = pneg %p71
        %p233 = pneg %p95
        %p234 = pneg %p92
        %p235 = pneg %p116
        %p236 = pneg %p113
        %p237 = pneg %p144
        %p238 = pneg %p141
        %s239 = sand.u32 %s131, 1
        %s240 = scalar_lea.sflag [#allocation4], %s239
        %s241 = sand.u32 %s131, 1
        %s242 = smul.addr %s241, 320
        %s243 = scalar_lea.vmem [#allocation3], %s242
        %s244 = smul.u32 2, %s23
        %v245 = vld [vmem:[%s1] sm:$0xff]
        %v246 = vld [vmem:[%s1 + $0x8] sm:$0xff]
        %v247 = vld [vmem:[%s1 + $0x10] sm:$0xff]
        %v248 = vld [vmem:[%s1 + $0x18] sm:$0xff]
        %v249 = vld [vmem:[%s1 + $0x20] sm:$0xff]
        %v250 = vld [vmem:[%s1 + $0x28] sm:$0xff]
        %v251 = vld [vmem:[%s1 + $0x30] sm:$0xff]
        %v252 = vld [vmem:[%s1 + $0x38] sm:$0xff]
        %v253 = vld [vmem:[%s1 + $0x40] sm:$0xff]
        %v254 = vld [vmem:[%s1 + $0x48] sm:$0xff]
        %v255 = vld [vmem:[%s1 + $0x50] sm:$0xff]
        %v256 = vld [vmem:[%s1 + $0x58] sm:$0xff]
        %v257 = vld [vmem:[%s1 + $0x60] sm:$0xff]
        %v258 = vld [vmem:[%s1 + $0x68] sm:$0xff]
        %v259 = vld [vmem:[%s1 + $0x70] sm:$0xff]
        %v260 = vld [vmem:[%s1 + $0x78] sm:$0xff]
        %v261 = vld [vmem:[%s1 + $0x80] sm:$0xff]
        %v262 = vld [vmem:[%s1 + $0x88] sm:$0xff]
        %v263 = vld [vmem:[%s1 + $0x90] sm:$0xff]
        %v264 = vld [vmem:[%s1 + $0x98] sm:$0xff]
        %v265 = vld [vmem:[%s1 + $0xa0] sm:$0xff]
        %v266 = vld [vmem:[%s1 + $0xa8] sm:$0xff]
        %v267 = vld [vmem:[%s1 + $0xb0] sm:$0xff]
        %v268 = vld [vmem:[%s1 + $0xb8] sm:$0xff]
        %v269 = vld [vmem:[%s1 + $0xc0] sm:$0xff]
        %v270 = vld [vmem:[%s1 + $0xc8] sm:$0xff]
        %v271 = vld [vmem:[%s1 + $0xd0] sm:$0xff]
        %v272 = vld [vmem:[%s1 + $0xd8] sm:$0xff]
        %v273 = vld [vmem:[%s1 + $0xe0] sm:$0xff]
        %v274 = vld [vmem:[%s1 + $0xe8] sm:$0xff]
        %v275 = vld [vmem:[%s1 + $0xf0] sm:$0xff]
        %v276 = vld [vmem:[%s1 + $0xf8] sm:$0xff]
        %v277 = vld [vmem:[%s1 + $0x100] sm:$0xff]
        %v278 = vld [vmem:[%s1 + $0x108] sm:$0xff]
        %v279 = vld [vmem:[%s1 + $0x110] sm:$0xff]
        %v280 = vld [vmem:[%s1 + $0x118] sm:$0xff]
        %v281 = vld [vmem:[%s1 + $0x120] sm:$0xff]
        %v282 = vld [vmem:[%s1 + $0x128] sm:$0xff]
        %v283 = vld [vmem:[%s1 + $0x130] sm:$0xff]
        %v284 = vld [vmem:[%s1 + $0x138] sm:$0xff]
        %v285 = vld [vmem:[%s221] sm:$0xff]
        %v286 = vld [vmem:[%s221 + $0x8] sm:$0xff]
        %v287 = vld [vmem:[%s221 + $0x10] sm:$0xff]
        %v288 = vld [vmem:[%s221 + $0x18] sm:$0xff]
        %v289 = vld [vmem:[%s221 + $0x20] sm:$0xff]
        %v290 = vld [vmem:[%s221 + $0x28] sm:$0xff]
        %vm291 = vcmask 195584
        %v293 = vsel %vm291, %v245, 0
        %v296 = vsel %vm291, %v246, 0
        %v299 = vsel %vm291, %v247, 0
        %v302 = vsel %vm291, %v248, 0
        %v305 = vsel %vm291, %v249, 0
        %v308 = vsel %vm291, %v250, 0
        %v311 = vsel %vm291, %v251, 0
        %v314 = vsel %vm291, %v252, 0
        %v317 = vsel %vm291, %v253, 0
        %v320 = vsel %vm291, %v254, 0
        %v323 = vsel %vm291, %v255, 0
        %v326 = vsel %vm291, %v256, 0
        %v329 = vsel %vm291, %v257, 0
        %v332 = vsel %vm291, %v258, 0
        %v335 = vsel %vm291, %v259, 0
        %v338 = vsel %vm291, %v260, 0
        %v341 = vsel %vm291, %v261, 0
        %v344 = vsel %vm291, %v262, 0
        %v347 = vsel %vm291, %v263, 0
        %v350 = vsel %vm291, %v264, 0
        %v353 = vsel %vm291, %v265, 0
        %v356 = vsel %vm291, %v266, 0
        %v359 = vsel %vm291, %v267, 0
        %v362 = vsel %vm291, %v268, 0
        %v365 = vsel %vm291, %v269, 0
        %v368 = vsel %vm291, %v270, 0
        %v371 = vsel %vm291, %v271, 0
        %v374 = vsel %vm291, %v272, 0
        %v377 = vsel %vm291, %v273, 0
        %v380 = vsel %vm291, %v274, 0
        %v383 = vsel %vm291, %v275, 0
        %v386 = vsel %vm291, %v276, 0
        %v389 = vsel %vm291, %v277, 0
        %v392 = vsel %vm291, %v278, 0
        %v395 = vsel %vm291, %v279, 0
        %v398 = vsel %vm291, %v280, 0
        %v401 = vsel %vm291, %v281, 0
        %v404 = vsel %vm291, %v282, 0
        %v407 = vsel %vm291, %v283, 0
        %v410 = vsel %vm291, %v284, 0
        %412 = vmatprep.subr.mxu0 %v286
        %413 = vmatpush1.msra.mxu0 %v285
        %414 = vmatprep.subr.mxu0 %v288
        %415 = vmatpush1.msra.mxu0 %v287
        %416 = vmatprep.subr.mxu0 %v290
        %417 = vmatpush1.msra.mxu0 %v289
        %418 = vmatprep.subr.mxu0 0.0
        %419 = vmatpush1.msra.mxu0 0.0
        %420 = vmatprep.subr.mxu0 0.0
        %421 = vmatpush1.msra.mxu0 0.0
        %422 = vmatprep.subr.mxu0 0.0
        %423 = vmatpush1.msra.mxu0 0.0
        %424 = vmatprep.subr.mxu0 0.0
        %425 = vmatpush1.msra.mxu0 0.0
        %426 = vmatprep.subr.mxu0 0.0
        %427 = vmatpush1.msra.mxu0 0.0
        %428 = vmatprep.subr.mxu0 0.0
        %429 = vmatpush1.msra.mxu0 0.0
        %430 = vmatprep.subr.mxu0 0.0
        %431 = vmatpush1.msra.mxu0 0.0
        %432 = vmatprep.subr.mxu0 0.0
        %433 = vmatpush1.msra.mxu0 0.0
        %434 = vmatprep.subr.mxu0 0.0
        %435 = vmatpush1.msra.mxu0 0.0
        %436 = vmatprep.subr.mxu0 0.0
        %437 = vmatpush1.msra.mxu0 0.0
        %438 = vmatprep.subr.mxu0 0.0
        %439 = vmatpush1.msra.mxu0 0.0
        %440 = vmatprep.subr.mxu0 0.0
        %441 = vmatpush1.msra.mxu0 0.0
        %442 = vmatprep.subr.mxu0 0.0
        %443 = vmatpush1.msra.mxu0 0.0
        %444 = vmatprep.subr.mxu0 0.0
        %445 = vmatpush1.msra.mxu0 0.0
        %446 = vmatprep.subr.mxu0 0.0
        %447 = vmatpush1.msra.mxu0 0.0
        %448 = vmatprep.subr.mxu0 0.0
        %449 = vmatpush1.msra.mxu0 0.0
        %450 = vmatprep.subr.mxu0 0.0
        %451 = vmatpush1.msra.mxu0 0.0
        %452 = vmatprep.subr.mxu0 0.0
        %453 = vmatpush1.msra.mxu0 0.0
        %454 = vmatprep.subr.mxu0 0.0
        %455 = vmatpush1.msra.mxu0 0.0
        %456 = vmatprep.subr.mxu0 0.0
        %457 = vmatpush1.msra.mxu0 0.0
        %458 = vmatprep.subr.mxu0 0.0
        %459 = vmatpush1.msra.mxu0 0.0
        %460 = vmatprep.subr.mxu0 0.0
        %461 = vmatpush1.msra.mxu0 0.0
        %462 = vmatprep.subr.mxu0 0.0
        %463 = vmatpush1.msra.mxu0 0.0
        %464 = vmatprep.subr.mxu0 0.0
        %465 = vmatpush1.msra.mxu0 0.0
        %466 = vmatprep.subr.mxu0 0.0
        %467 = vmatpush1.msra.mxu0 0.0
        %468 = vmatprep.subr.mxu0 0.0
        %469 = vmatpush1.msra.mxu0 0.0
        %470 = vmatprep.subr.mxu0 0.0
        %471 = vmatpush1.msra.mxu0 0.0
        %472 = vmatprep.subr.mxu0 0.0
        %473 = vmatpush1.msra.mxu0 0.0
        %474 = vmatprep.subr.mxu0 0.0
        %475 = vmatpush1.msra.mxu0 0.0
        %476 = vmatprep.mubr.f32.mxu0 0.0
        %477 = vmatmul.mubr.f32.gmra.mrb[0].mxu0 %v293
        %v478 = vpop.f32.mrb[0].mxu0
        %v479 = vadd.f32 0.0, %v478
        %v480 = vpop.f32.mrb[0].mxu0
        %v481 = vadd.f32 0.0, %v480
        %482 = vmatprep.mubr.f32.mxu0 0.0
        %483 = vmatmul.mubr.f32.gmra.mrb[0].mxu0 %v296
        %v484 = vpop.f32.mrb[0].mxu0
        %v485 = vadd.f32 0.0, %v484
        %v486 = vpop.f32.mrb[0].mxu0
        %v487 = vadd.f32 0.0, %v486
        %488 = vmatprep.mubr.f32.mxu0 0.0
        %489 = vmatmul.mubr.f32.gmra.mrb[0].mxu0 %v299
        %v490 = vpop.f32.mrb[0].mxu0
        %v491 = vadd.f32 0.0, %v490
        %v492 = vpop.f32.mrb[0].mxu0
        %v493 = vadd.f32 0.0, %v492
        %494 = vmatprep.mubr.f32.mxu0 0.0
        %495 = vmatmul.mubr.f32.gmra.mrb[0].mxu0 %v302
        %v496 = vpop.f32.mrb[0].mxu0
        %v497 = vadd.f32 0.0, %v496
        %v498 = vpop.f32.mrb[0].mxu0
        %v499 = vadd.f32 0.0, %v498
        %500 = vmatprep.mubr.f32.mxu0 0.0
        %501 = vmatmul.mubr.f32.gmra.mrb[0].mxu0 %v305
        %v502 = vpop.f32.mrb[0].mxu0
        %v503 = vadd.f32 0.0, %v502
        %v504 = vpop.f32.mrb[0].mxu0
        %v505 = vadd.f32 0.0, %v504
        %506 = vmatprep.mubr.f32.mxu0 0.0
        %507 = vmatmul.mubr.f32.gmra.mrb[0].mxu0 %v308
        %v508 = vpop.f32.mrb[0].mxu0
        %v509 = vadd.f32 0.0, %v508
        %v510 = vpop.f32.mrb[0].mxu0
        %v511 = vadd.f32 0.0, %v510
        %512 = vmatprep.mubr.f32.mxu0 0.0
        %513 = vmatmul.mubr.f32.gmra.mrb[0].mxu0 %v311
        %v514 = vpop.f32.mrb[0].mxu0
        %v515 = vadd.f32 0.0, %v514
        %v516 = vpop.f32.mrb[0].mxu0
        %v517 = vadd.f32 0.0, %v516
        %518 = vmatprep.mubr.f32.mxu0 0.0
        %519 = vmatmul.mubr.f32.gmra.mrb[0].mxu0 %v314
        %v520 = vpop.f32.mrb[0].mxu0
        %v521 = vadd.f32 0.0, %v520
        %v522 = vpop.f32.mrb[0].mxu0
        %v523 = vadd.f32 0.0, %v522
        %524 = vmatprep.mubr.f32.mxu0 0.0
        %525 = vmatmul.mubr.f32.gmra.mrb[0].mxu0 %v317
        %v526 = vpop.f32.mrb[0].mxu0
        %v527 = vadd.f32 0.0, %v526
        %v528 = vpop.f32.mrb[0].mxu0
        %v529 = vadd.f32 0.0, %v528
        %530 = vmatprep.mubr.f32.mxu0 0.0
        %531 = vmatmul.mubr.f32.gmra.mrb[0].mxu0 %v320
        %v532 = vpop.f32.mrb[0].mxu0
        %v533 = vadd.f32 0.0, %v532
        %v534 = vpop.f32.mrb[0].mxu0
        %v535 = vadd.f32 0.0, %v534
        %536 = vmatprep.mubr.f32.mxu0 0.0
        %537 = vmatmul.mubr.f32.gmra.mrb[0].mxu0 %v323
        %v538 = vpop.f32.mrb[0].mxu0
        %v539 = vadd.f32 0.0, %v538
        %v540 = vpop.f32.mrb[0].mxu0
        %v541 = vadd.f32 0.0, %v540
        %542 = vmatprep.mubr.f32.mxu0 0.0
        %543 = vmatmul.mubr.f32.gmra.mrb[0].mxu0 %v326
        %v544 = vpop.f32.mrb[0].mxu0
        %v545 = vadd.f32 0.0, %v544
        %v546 = vpop.f32.mrb[0].mxu0
        %v547 = vadd.f32 0.0, %v546
        %548 = vmatprep.mubr.f32.mxu0 0.0
        %549 = vmatmul.mubr.f32.gmra.mrb[0].mxu0 %v329
        %v550 = vpop.f32.mrb[0].mxu0
        %v551 = vadd.f32 0.0, %v550
        %v552 = vpop.f32.mrb[0].mxu0
        %v553 = vadd.f32 0.0, %v552
        %554 = vmatprep.mubr.f32.mxu0 0.0
        %555 = vmatmul.mubr.f32.gmra.mrb[0].mxu0 %v332
        %v556 = vpop.f32.mrb[0].mxu0
        %v557 = vadd.f32 0.0, %v556
        %v558 = vpop.f32.mrb[0].mxu0
        %v559 = vadd.f32 0.0, %v558
        %560 = vmatprep.mubr.f32.mxu0 0.0
        %561 = vmatmul.mubr.f32.gmra.mrb[0].mxu0 %v335
        %v562 = vpop.f32.mrb[0].mxu0
        %v563 = vadd.f32 0.0, %v562
        %v564 = vpop.f32.mrb[0].mxu0
        %v565 = vadd.f32 0.0, %v564
        %566 = vmatprep.mubr.f32.mxu0 0.0
        %567 = vmatmul.mubr.f32.gmra.mrb[0].mxu0 %v338
        %v568 = vpop.f32.mrb[0].mxu0
        %v569 = vadd.f32 0.0, %v568
        %v570 = vpop.f32.mrb[0].mxu0
        %v571 = vadd.f32 0.0, %v570
        %572 = vmatprep.mubr.f32.mxu0 0.0
        %573 = vmatmul.mubr.f32.gmra.mrb[0].mxu0 %v341
        %v574 = vpop.f32.mrb[0].mxu0
        %v575 = vadd.f32 0.0, %v574
        %v576 = vpop.f32.mrb[0].mxu0
        %v577 = vadd.f32 0.0, %v576
        %578 = vmatprep.mubr.f32.mxu0 0.0
        %579 = vmatmul.mubr.f32.gmra.mrb[0].mxu0 %v344
        %v580 = vpop.f32.mrb[0].mxu0
        %v581 = vadd.f32 0.0, %v580
        %v582 = vpop.f32.mrb[0].mxu0
        %v583 = vadd.f32 0.0, %v582
        %584 = vmatprep.mubr.f32.mxu0 0.0
        %585 = vmatmul.mubr.f32.gmra.mrb[0].mxu0 %v347
        %v586 = vpop.f32.mrb[0].mxu0
        %v587 = vadd.f32 0.0, %v586
        %v588 = vpop.f32.mrb[0].mxu0
        %v589 = vadd.f32 0.0, %v588
        %590 = vmatprep.mubr.f32.mxu0 0.0
        %591 = vmatmul.mubr.f32.gmra.mrb[0].mxu0 %v350
        %v592 = vpop.f32.mrb[0].mxu0
        %v593 = vadd.f32 0.0, %v592
        %v594 = vpop.f32.mrb[0].mxu0
        %v595 = vadd.f32 0.0, %v594
        %596 = vmatprep.mubr.f32.mxu0 0.0
        %597 = vmatmul.mubr.f32.gmra.mrb[0].mxu0 %v353
        %v598 = vpop.f32.mrb[0].mxu0
        %v599 = vadd.f32 0.0, %v598
        %v600 = vpop.f32.mrb[0].mxu0
        %v601 = vadd.f32 0.0, %v600
        %602 = vmatprep.mubr.f32.mxu0 0.0
        %603 = vmatmul.mubr.f32.gmra.mrb[0].mxu0 %v356
        %v604 = vpop.f32.mrb[0].mxu0
        %v605 = vadd.f32 0.0, %v604
        %v606 = vpop.f32.mrb[0].mxu0
        %v607 = vadd.f32 0.0, %v606
        %608 = vmatprep.mubr.f32.mxu0 0.0
        %609 = vmatmul.mubr.f32.gmra.mrb[0].mxu0 %v359
        %v610 = vpop.f32.mrb[0].mxu0
        %v611 = vadd.f32 0.0, %v610
        %v612 = vpop.f32.mrb[0].mxu0
        %v613 = vadd.f32 0.0, %v612
        %614 = vmatprep.mubr.f32.mxu0 0.0
        %615 = vmatmul.mubr.f32.gmra.mrb[0].mxu0 %v362
        %v616 = vpop.f32.mrb[0].mxu0
        %v617 = vadd.f32 0.0, %v616
        %v618 = vpop.f32.mrb[0].mxu0
        %v619 = vadd.f32 0.0, %v618
        %620 = vmatprep.mubr.f32.mxu0 0.0
        %621 = vmatmul.mubr.f32.gmra.mrb[0].mxu0 %v365
        %v622 = vpop.f32.mrb[0].mxu0
        %v623 = vadd.f32 0.0, %v622
        %v624 = vpop.f32.mrb[0].mxu0
        %v625 = vadd.f32 0.0, %v624
        %626 = vmatprep.mubr.f32.mxu0 0.0
        %627 = vmatmul.mubr.f32.gmra.mrb[0].mxu0 %v368
        %v628 = vpop.f32.mrb[0].mxu0
        %v629 = vadd.f32 0.0, %v628
        %v630 = vpop.f32.mrb[0].mxu0
        %v631 = vadd.f32 0.0, %v630
        %632 = vmatprep.mubr.f32.mxu0 0.0
        %633 = vmatmul.mubr.f32.gmra.mrb[0].mxu0 %v371
        %v634 = vpop.f32.mrb[0].mxu0
        %v635 = vadd.f32 0.0, %v634
        %v636 = vpop.f32.mrb[0].mxu0
        %v637 = vadd.f32 0.0, %v636
        %638 = vmatprep.mubr.f32.mxu0 0.0
        %639 = vmatmul.mubr.f32.gmra.mrb[0].mxu0 %v374
        %v640 = vpop.f32.mrb[0].mxu0
        %v641 = vadd.f32 0.0, %v640
        %v642 = vpop.f32.mrb[0].mxu0
        %v643 = vadd.f32 0.0, %v642
        %644 = vmatprep.mubr.f32.mxu0 0.0
        %645 = vmatmul.mubr.f32.gmra.mrb[0].mxu0 %v377
        %v646 = vpop.f32.mrb[0].mxu0
        %v647 = vadd.f32 0.0, %v646
        %v648 = vpop.f32.mrb[0].mxu0
        %v649 = vadd.f32 0.0, %v648
        %650 = vmatprep.mubr.f32.mxu0 0.0
        %651 = vmatmul.mubr.f32.gmra.mrb[0].mxu0 %v380
        %v652 = vpop.f32.mrb[0].mxu0
        %v653 = vadd.f32 0.0, %v652
        %v654 = vpop.f32.mrb[0].mxu0
        %v655 = vadd.f32 0.0, %v654
        %656 = vmatprep.mubr.f32.mxu0 0.0
        %657 = vmatmul.mubr.f32.gmra.mrb[0].mxu0 %v383
        %v658 = vpop.f32.mrb[0].mxu0
        %v659 = vadd.f32 0.0, %v658
        %v660 = vpop.f32.mrb[0].mxu0
        %v661 = vadd.f32 0.0, %v660
        %662 = vmatprep.mubr.f32.mxu0 0.0
        %663 = vmatmul.mubr.f32.gmra.mrb[0].mxu0 %v386
        %v664 = vpop.f32.mrb[0].mxu0
        %v665 = vadd.f32 0.0, %v664
        %v666 = vpop.f32.mrb[0].mxu0
        %v667 = vadd.f32 0.0, %v666
        %668 = vmatprep.mubr.f32.mxu0 0.0
        %669 = vmatmul.mubr.f32.gmra.mrb[0].mxu0 %v389
        %v670 = vpop.f32.mrb[0].mxu0
        %v671 = vadd.f32 0.0, %v670
        %v672 = vpop.f32.mrb[0].mxu0
        %v673 = vadd.f32 0.0, %v672
        %674 = vmatprep.mubr.f32.mxu0 0.0
        %675 = vmatmul.mubr.f32.gmra.mrb[0].mxu0 %v392
        %v676 = vpop.f32.mrb[0].mxu0
        %v677 = vadd.f32 0.0, %v676
        %v678 = vpop.f32.mrb[0].mxu0
        %v679 = vadd.f32 0.0, %v678
        %680 = vmatprep.mubr.f32.mxu0 0.0
        %681 = vmatmul.mubr.f32.gmra.mrb[0].mxu0 %v395
        %v682 = vpop.f32.mrb[0].mxu0
        %v683 = vadd.f32 0.0, %v682
        %v684 = vpop.f32.mrb[0].mxu0
        %v685 = vadd.f32 0.0, %v684
        %686 = vmatprep.mubr.f32.mxu0 0.0
        %687 = vmatmul.mubr.f32.gmra.mrb[0].mxu0 %v398
        %v688 = vpop.f32.mrb[0].mxu0
        %v689 = vadd.f32 0.0, %v688
        %v690 = vpop.f32.mrb[0].mxu0
        %v691 = vadd.f32 0.0, %v690
        %692 = vmatprep.mubr.f32.mxu0 0.0
        %693 = vmatmul.mubr.f32.gmra.mrb[0].mxu0 %v401
        %v694 = vpop.f32.mrb[0].mxu0
        %v695 = vadd.f32 0.0, %v694
        %v696 = vpop.f32.mrb[0].mxu0
        %v697 = vadd.f32 0.0, %v696
        %698 = vmatprep.mubr.f32.mxu0 0.0
        %699 = vmatmul.mubr.f32.gmra.mrb[0].mxu0 %v404
        %v700 = vpop.f32.mrb[0].mxu0
        %v701 = vadd.f32 0.0, %v700
        %v702 = vpop.f32.mrb[0].mxu0
        %v703 = vadd.f32 0.0, %v702
        %704 = vmatprep.mubr.f32.mxu0 0.0
        %705 = vmatmul.mubr.f32.gmra.mrb[0].mxu0 %v407
        %v706 = vpop.f32.mrb[0].mxu0
        %v707 = vadd.f32 0.0, %v706
        %v708 = vpop.f32.mrb[0].mxu0
        %v709 = vadd.f32 0.0, %v708
        %710 = vmatprep.mubr.f32.mxu0 0.0
        %711 = vmatmul.mubr.f32.gmra.mrb[0].mxu0 %v410
        %v712 = vpop.f32.mrb[0].mxu0
        %v713 = vadd.f32 0.0, %v712
        %v714 = vpop.f32.mrb[0].mxu0
        %v715 = vadd.f32 0.0, %v714
        %716 = vdwg.mxu0
        %v717 = vld [vmem:[%s2] sm:$0xff]
        %v718 = vld [vmem:[%s2 + $0x8] sm:$0xff]
        %v719 = vld [vmem:[%s2 + $0x10] sm:$0xff]
        %v720 = vld [vmem:[%s2 + $0x18] sm:$0xff]
        %v721 = vld [vmem:[%s2 + $0x20] sm:$0xff]
        %v722 = vld [vmem:[%s2 + $0x28] sm:$0xff]
        %v723 = vld [vmem:[%s2 + $0x30] sm:$0xff]
        %v724 = vld [vmem:[%s2 + $0x38] sm:$0xff]
        %v725 = vld [vmem:[%s2 + $0x40] sm:$0xff]
        %v726 = vld [vmem:[%s2 + $0x48] sm:$0xff]
        %v727 = vld [vmem:[%s2 + $0x50] sm:$0xff]
        %v728 = vld [vmem:[%s2 + $0x58] sm:$0xff]
        %v729 = vld [vmem:[%s2 + $0x60] sm:$0xff]
        %v730 = vld [vmem:[%s2 + $0x68] sm:$0xff]
        %v731 = vld [vmem:[%s2 + $0x70] sm:$0xff]
        %v732 = vld [vmem:[%s2 + $0x78] sm:$0xff]
        %v733 = vld [vmem:[%s2 + $0x80] sm:$0xff]
        %v734 = vld [vmem:[%s2 + $0x88] sm:$0xff]
        %v735 = vld [vmem:[%s2 + $0x90] sm:$0xff]
        %v736 = vld [vmem:[%s2 + $0x98] sm:$0xff]
        %v737 = vld [vmem:[%s2 + $0xa0] sm:$0xff]
        %v738 = vld [vmem:[%s2 + $0xa8] sm:$0xff]
        %v739 = vld [vmem:[%s2 + $0xb0] sm:$0xff]
        %v740 = vld [vmem:[%s2 + $0xb8] sm:$0xff]
        %v741 = vld [vmem:[%s2 + $0xc0] sm:$0xff]
        %v742 = vld [vmem:[%s2 + $0xc8] sm:$0xff]
        %v743 = vld [vmem:[%s2 + $0xd0] sm:$0xff]
        %v744 = vld [vmem:[%s2 + $0xd8] sm:$0xff]
        %v745 = vld [vmem:[%s2 + $0xe0] sm:$0xff]
        %v746 = vld [vmem:[%s2 + $0xe8] sm:$0xff]
        %v747 = vld [vmem:[%s2 + $0xf0] sm:$0xff]
        %v748 = vld [vmem:[%s2 + $0xf8] sm:$0xff]
        %v749 = vld [vmem:[%s2 + $0x100] sm:$0xff]
        %v750 = vld [vmem:[%s2 + $0x108] sm:$0xff]
        %v751 = vld [vmem:[%s2 + $0x110] sm:$0xff]
        %v752 = vld [vmem:[%s2 + $0x118] sm:$0xff]
        %v753 = vld [vmem:[%s2 + $0x120] sm:$0xff]
        %v754 = vld [vmem:[%s2 + $0x128] sm:$0xff]
        %v755 = vld [vmem:[%s2 + $0x130] sm:$0xff]
        %v756 = vld [vmem:[%s2 + $0x138] sm:$0xff]
        %758 = vset.pattern.permute.xlu0 0
        %759 = vperm.xlu0 %758, %v717
        %v760 = vpop.permute.xlu0 %759
        %763 = vset.pattern.permute.xlu0 0
        %764 = vperm.xlu0 %763, %v718
        %v765 = vpop.permute.xlu0 %764
        %768 = vset.pattern.permute.xlu0 0
        %769 = vperm.xlu0 %768, %v719
        %v770 = vpop.permute.xlu0 %769
        %773 = vset.pattern.permute.xlu0 0
        %774 = vperm.xlu0 %773, %v720
        %v775 = vpop.permute.xlu0 %774
        %778 = vset.pattern.permute.xlu0 0
        %779 = vperm.xlu0 %778, %v721
        %v780 = vpop.permute.xlu0 %779
        %783 = vset.pattern.permute.xlu0 0
        %784 = vperm.xlu0 %783, %v722
        %v785 = vpop.permute.xlu0 %784
        %788 = vset.pattern.permute.xlu0 0
        %789 = vperm.xlu0 %788, %v723
        %v790 = vpop.permute.xlu0 %789
        %793 = vset.pattern.permute.xlu0 0
        %794 = vperm.xlu0 %793, %v724
        %v795 = vpop.permute.xlu0 %794
        %798 = vset.pattern.permute.xlu0 0
        %799 = vperm.xlu0 %798, %v725
        %v800 = vpop.permute.xlu0 %799
        %803 = vset.pattern.permute.xlu0 0
        %804 = vperm.xlu0 %803, %v726
        %v805 = vpop.permute.xlu0 %804
        %808 = vset.pattern.permute.xlu0 0
        %809 = vperm.xlu0 %808, %v727
        %v810 = vpop.permute.xlu0 %809
        %813 = vset.pattern.permute.xlu0 0
        %814 = vperm.xlu0 %813, %v728
        %v815 = vpop.permute.xlu0 %814
        %818 = vset.pattern.permute.xlu0 0
        %819 = vperm.xlu0 %818, %v729
        %v820 = vpop.permute.xlu0 %819
        %823 = vset.pattern.permute.xlu0 0
        %824 = vperm.xlu0 %823, %v730
        %v825 = vpop.permute.xlu0 %824
        %828 = vset.pattern.permute.xlu0 0
        %829 = vperm.xlu0 %828, %v731
        %v830 = vpop.permute.xlu0 %829
        %833 = vset.pattern.permute.xlu0 0
        %834 = vperm.xlu0 %833, %v732
        %v835 = vpop.permute.xlu0 %834
        %838 = vset.pattern.permute.xlu0 0
        %839 = vperm.xlu0 %838, %v733
        %v840 = vpop.permute.xlu0 %839
        %843 = vset.pattern.permute.xlu0 0
        %844 = vperm.xlu0 %843, %v734
        %v845 = vpop.permute.xlu0 %844
        %848 = vset.pattern.permute.xlu0 0
        %849 = vperm.xlu0 %848, %v735
        %v850 = vpop.permute.xlu0 %849
        %853 = vset.pattern.permute.xlu0 0
        %854 = vperm.xlu0 %853, %v736
        %v855 = vpop.permute.xlu0 %854
        %858 = vset.pattern.permute.xlu0 0
        %859 = vperm.xlu0 %858, %v737
        %v860 = vpop.permute.xlu0 %859
        %863 = vset.pattern.permute.xlu0 0
        %864 = vperm.xlu0 %863, %v738
        %v865 = vpop.permute.xlu0 %864
        %868 = vset.pattern.permute.xlu0 0
        %869 = vperm.xlu0 %868, %v739
        %v870 = vpop.permute.xlu0 %869
        %873 = vset.pattern.permute.xlu0 0
        %874 = vperm.xlu0 %873, %v740
        %v875 = vpop.permute.xlu0 %874
        %878 = vset.pattern.permute.xlu0 0
        %879 = vperm.xlu0 %878, %v741
        %v880 = vpop.permute.xlu0 %879
        %883 = vset.pattern.permute.xlu0 0
        %884 = vperm.xlu0 %883, %v742
        %v885 = vpop.permute.xlu0 %884
        %888 = vset.pattern.permute.xlu0 0
        %889 = vperm.xlu0 %888, %v743
        %v890 = vpop.permute.xlu0 %889
        %893 = vset.pattern.permute.xlu0 0
        %894 = vperm.xlu0 %893, %v744
        %v895 = vpop.permute.xlu0 %894
        %898 = vset.pattern.permute.xlu0 0
        %899 = vperm.xlu0 %898, %v745
        %v900 = vpop.permute.xlu0 %899
        %903 = vset.pattern.permute.xlu0 0
        %904 = vperm.xlu0 %903, %v746
        %v905 = vpop.permute.xlu0 %904
        %908 = vset.pattern.permute.xlu0 0
        %909 = vperm.xlu0 %908, %v747
        %v910 = vpop.permute.xlu0 %909
        %913 = vset.pattern.permute.xlu0 0
        %914 = vperm.xlu0 %913, %v748
        %v915 = vpop.permute.xlu0 %914
        %918 = vset.pattern.permute.xlu0 0
        %919 = vperm.xlu0 %918, %v749
        %v920 = vpop.permute.xlu0 %919
        %923 = vset.pattern.permute.xlu0 0
        %924 = vperm.xlu0 %923, %v750
        %v925 = vpop.permute.xlu0 %924
        %928 = vset.pattern.permute.xlu0 0
        %929 = vperm.xlu0 %928, %v751
        %v930 = vpop.permute.xlu0 %929
        %933 = vset.pattern.permute.xlu0 0
        %934 = vperm.xlu0 %933, %v752
        %v935 = vpop.permute.xlu0 %934
        %938 = vset.pattern.permute.xlu0 0
        %939 = vperm.xlu0 %938, %v753
        %v940 = vpop.permute.xlu0 %939
        %943 = vset.pattern.permute.xlu0 0
        %944 = vperm.xlu0 %943, %v754
        %v945 = vpop.permute.xlu0 %944
        %948 = vset.pattern.permute.xlu0 0
        %949 = vperm.xlu0 %948, %v755
        %v950 = vpop.permute.xlu0 %949
        %953 = vset.pattern.permute.xlu0 0
        %954 = vperm.xlu0 %953, %v756
        %v955 = vpop.permute.xlu0 %954
        %v957 = vmul.f32 %v479, %v760
        %v958 = vmul.f32 %v481, %v760
        %v959 = vmul.f32 %v485, %v765
        %v960 = vmul.f32 %v487, %v765
        %v961 = vmul.f32 %v491, %v770
        %v962 = vmul.f32 %v493, %v770
        %v963 = vmul.f32 %v497, %v775
        %v964 = vmul.f32 %v499, %v775
        %v965 = vmul.f32 %v503, %v780
        %v966 = vmul.f32 %v505, %v780
        %v967 = vmul.f32 %v509, %v785
        %v968 = vmul.f32 %v511, %v785
        %v969 = vmul.f32 %v515, %v790
        %v970 = vmul.f32 %v517, %v790
        %v971 = vmul.f32 %v521, %v795
        %v972 = vmul.f32 %v523, %v795
        %v973 = vmul.f32 %v527, %v800
        %v974 = vmul.f32 %v529, %v800
        %v975 = vmul.f32 %v533, %v805
        %v976 = vmul.f32 %v535, %v805
        %v977 = vmul.f32 %v539, %v810
        %v978 = vmul.f32 %v541, %v810
        %v979 = vmul.f32 %v545, %v815
        %v980 = vmul.f32 %v547, %v815
        %v981 = vmul.f32 %v551, %v820
        %v982 = vmul.f32 %v553, %v820
        %v983 = vmul.f32 %v557, %v825
        %v984 = vmul.f32 %v559, %v825
        %v985 = vmul.f32 %v563, %v830
        %v986 = vmul.f32 %v565, %v830
        %v987 = vmul.f32 %v569, %v835
        %v988 = vmul.f32 %v571, %v835
        %v989 = vmul.f32 %v575, %v840
        %v990 = vmul.f32 %v577, %v840
        %v991 = vmul.f32 %v581, %v845
        %v992 = vmul.f32 %v583, %v845
        %v993 = vmul.f32 %v587, %v850
        %v994 = vmul.f32 %v589, %v850
        %v995 = vmul.f32 %v593, %v855
        %v996 = vmul.f32 %v595, %v855
        %v997 = vmul.f32 %v599, %v860
        %v998 = vmul.f32 %v601, %v860
        %v999 = vmul.f32 %v605, %v865
        %v1000 = vmul.f32 %v607, %v865
        %v1001 = vmul.f32 %v611, %v870
        %v1002 = vmul.f32 %v613, %v870
        %v1003 = vmul.f32 %v617, %v875
        %v1004 = vmul.f32 %v619, %v875
        %v1005 = vmul.f32 %v623, %v880
        %v1006 = vmul.f32 %v625, %v880
        %v1007 = vmul.f32 %v629, %v885
        %v1008 = vmul.f32 %v631, %v885
        %v1009 = vmul.f32 %v635, %v890
        %v1010 = vmul.f32 %v637, %v890
        %v1011 = vmul.f32 %v641, %v895
        %v1012 = vmul.f32 %v643, %v895
        %v1013 = vmul.f32 %v647, %v900
        %v1014 = vmul.f32 %v649, %v900
        %v1015 = vmul.f32 %v653, %v905
        %v1016 = vmul.f32 %v655, %v905
        %v1017 = vmul.f32 %v659, %v910
        %v1018 = vmul.f32 %v661, %v910
        %v1019 = vmul.f32 %v665, %v915
        %v1020 = vmul.f32 %v667, %v915
        %v1021 = vmul.f32 %v671, %v920
        %v1022 = vmul.f32 %v673, %v920
        %v1023 = vmul.f32 %v677, %v925
        %v1024 = vmul.f32 %v679, %v925
        %v1025 = vmul.f32 %v683, %v930
        %v1026 = vmul.f32 %v685, %v930
        %v1027 = vmul.f32 %v689, %v935
        %v1028 = vmul.f32 %v691, %v935
        %v1029 = vmul.f32 %v695, %v940
        %v1030 = vmul.f32 %v697, %v940
        %v1031 = vmul.f32 %v701, %v945
        %v1032 = vmul.f32 %v703, %v945
        %v1033 = vmul.f32 %v707, %v950
        %v1034 = vmul.f32 %v709, %v950
        %v1035 = vmul.f32 %v713, %v955
        %v1036 = vmul.f32 %v715, %v955
        %v1037 = vld [vmem:[%s3] sm:$0xff]
        %v1038 = vld [vmem:[%s3 + $0x8] sm:$0xff]
        %v1039 = vld [vmem:[%s3 + $0x10] sm:$0xff]
        %v1040 = vld [vmem:[%s3 + $0x18] sm:$0xff]
        %v1041 = vld [vmem:[%s3 + $0x20] sm:$0xff]
        %v1042 = vld [vmem:[%s3 + $0x28] sm:$0xff]
        %v1043 = vld [vmem:[%s3 + $0x30] sm:$0xff]
        %v1044 = vld [vmem:[%s3 + $0x38] sm:$0xff]
        %v1045 = vld [vmem:[%s3 + $0x40] sm:$0xff]
        %v1046 = vld [vmem:[%s3 + $0x48] sm:$0xff]
        %v1047 = vld [vmem:[%s3 + $0x50] sm:$0xff]
        %v1048 = vld [vmem:[%s3 + $0x58] sm:$0xff]
        %v1049 = vld [vmem:[%s3 + $0x60] sm:$0xff]
        %v1050 = vld [vmem:[%s3 + $0x68] sm:$0xff]
        %v1051 = vld [vmem:[%s3 + $0x70] sm:$0xff]
        %v1052 = vld [vmem:[%s3 + $0x78] sm:$0xff]
        %v1053 = vld [vmem:[%s3 + $0x80] sm:$0xff]
        %v1054 = vld [vmem:[%s3 + $0x88] sm:$0xff]
        %v1055 = vld [vmem:[%s3 + $0x90] sm:$0xff]
        %v1056 = vld [vmem:[%s3 + $0x98] sm:$0xff]
        %v1057 = vld [vmem:[%s3 + $0xa0] sm:$0xff]
        %v1058 = vld [vmem:[%s3 + $0xa8] sm:$0xff]
        %v1059 = vld [vmem:[%s3 + $0xb0] sm:$0xff]
        %v1060 = vld [vmem:[%s3 + $0xb8] sm:$0xff]
        %v1061 = vld [vmem:[%s3 + $0xc0] sm:$0xff]
        %v1062 = vld [vmem:[%s3 + $0xc8] sm:$0xff]
        %v1063 = vld [vmem:[%s3 + $0xd0] sm:$0xff]
        %v1064 = vld [vmem:[%s3 + $0xd8] sm:$0xff]
        %v1065 = vld [vmem:[%s3 + $0xe0] sm:$0xff]
        %v1066 = vld [vmem:[%s3 + $0xe8] sm:$0xff]
        %v1067 = vld [vmem:[%s3 + $0xf0] sm:$0xff]
        %v1068 = vld [vmem:[%s3 + $0xf8] sm:$0xff]
        %v1069 = vld [vmem:[%s3 + $0x100] sm:$0xff]
        %v1070 = vld [vmem:[%s3 + $0x108] sm:$0xff]
        %v1071 = vld [vmem:[%s3 + $0x110] sm:$0xff]
        %v1072 = vld [vmem:[%s3 + $0x118] sm:$0xff]
        %v1073 = vld [vmem:[%s3 + $0x120] sm:$0xff]
        %v1074 = vld [vmem:[%s3 + $0x128] sm:$0xff]
        %v1075 = vld [vmem:[%s3 + $0x130] sm:$0xff]
        %v1076 = vld [vmem:[%s3 + $0x138] sm:$0xff]
        %1078 = vset.pattern.permute.xlu0 0
        %1079 = vperm.xlu0 %1078, %v1037
        %v1080 = vpop.permute.xlu0 %1079
        %1083 = vset.pattern.permute.xlu0 0
        %1084 = vperm.xlu0 %1083, %v1038
        %v1085 = vpop.permute.xlu0 %1084
        %1088 = vset.pattern.permute.xlu0 0
        %1089 = vperm.xlu0 %1088, %v1039
        %v1090 = vpop.permute.xlu0 %1089
        %1093 = vset.pattern.permute.xlu0 0
        %1094 = vperm.xlu0 %1093, %v1040
        %v1095 = vpop.permute.xlu0 %1094
        %1098 = vset.pattern.permute.xlu0 0
        %1099 = vperm.xlu0 %1098, %v1041
        %v1100 = vpop.permute.xlu0 %1099
        %1103 = vset.pattern.permute.xlu0 0
        %1104 = vperm.xlu0 %1103, %v1042
        %v1105 = vpop.permute.xlu0 %1104
        %1108 = vset.pattern.permute.xlu0 0
        %1109 = vperm.xlu0 %1108, %v1043
        %v1110 = vpop.permute.xlu0 %1109
        %1113 = vset.pattern.permute.xlu0 0
        %1114 = vperm.xlu0 %1113, %v1044
        %v1115 = vpop.permute.xlu0 %1114
        %1118 = vset.pattern.permute.xlu0 0
        %1119 = vperm.xlu0 %1118, %v1045
        %v1120 = vpop.permute.xlu0 %1119
        %1123 = vset.pattern.permute.xlu0 0
        %1124 = vperm.xlu0 %1123, %v1046
        %v1125 = vpop.permute.xlu0 %1124
        %1128 = vset.pattern.permute.xlu0 0
        %1129 = vperm.xlu0 %1128, %v1047
        %v1130 = vpop.permute.xlu0 %1129
        %1133 = vset.pattern.permute.xlu0 0
        %1134 = vperm.xlu0 %1133, %v1048
        %v1135 = vpop.permute.xlu0 %1134
        %1138 = vset.pattern.permute.xlu0 0
        %1139 = vperm.xlu0 %1138, %v1049
        %v1140 = vpop.permute.xlu0 %1139
        %1143 = vset.pattern.permute.xlu0 0
        %1144 = vperm.xlu0 %1143, %v1050
        %v1145 = vpop.permute.xlu0 %1144
        %1148 = vset.pattern.permute.xlu0 0
        %1149 = vperm.xlu0 %1148, %v1051
        %v1150 = vpop.permute.xlu0 %1149
        %1153 = vset.pattern.permute.xlu0 0
        %1154 = vperm.xlu0 %1153, %v1052
        %v1155 = vpop.permute.xlu0 %1154
        %1158 = vset.pattern.permute.xlu0 0
        %1159 = vperm.xlu0 %1158, %v1053
        %v1160 = vpop.permute.xlu0 %1159
        %1163 = vset.pattern.permute.xlu0 0
        %1164 = vperm.xlu0 %1163, %v1054
        %v1165 = vpop.permute.xlu0 %1164
        %1168 = vset.pattern.permute.xlu0 0
        %1169 = vperm.xlu0 %1168, %v1055
        %v1170 = vpop.permute.xlu0 %1169
        %1173 = vset.pattern.permute.xlu0 0
        %1174 = vperm.xlu0 %1173, %v1056
        %v1175 = vpop.permute.xlu0 %1174
        %1178 = vset.pattern.permute.xlu0 0
        %1179 = vperm.xlu0 %1178, %v1057
        %v1180 = vpop.permute.xlu0 %1179
        %1183 = vset.pattern.permute.xlu0 0
        %1184 = vperm.xlu0 %1183, %v1058
        %v1185 = vpop.permute.xlu0 %1184
        %1188 = vset.pattern.permute.xlu0 0
        %1189 = vperm.xlu0 %1188, %v1059
        %v1190 = vpop.permute.xlu0 %1189
        %1193 = vset.pattern.permute.xlu0 0
        %1194 = vperm.xlu0 %1193, %v1060
        %v1195 = vpop.permute.xlu0 %1194
        %1198 = vset.pattern.permute.xlu0 0
        %1199 = vperm.xlu0 %1198, %v1061
        %v1200 = vpop.permute.xlu0 %1199
        %1203 = vset.pattern.permute.xlu0 0
        %1204 = vperm.xlu0 %1203, %v1062
        %v1205 = vpop.permute.xlu0 %1204
        %1208 = vset.pattern.permute.xlu0 0
        %1209 = vperm.xlu0 %1208, %v1063
        %v1210 = vpop.permute.xlu0 %1209
        %1213 = vset.pattern.permute.xlu0 0
        %1214 = vperm.xlu0 %1213, %v1064
        %v1215 = vpop.permute.xlu0 %1214
        %1218 = vset.pattern.permute.xlu0 0
        %1219 = vperm.xlu0 %1218, %v1065
        %v1220 = vpop.permute.xlu0 %1219
        %1223 = vset.pattern.permute.xlu0 0
        %1224 = vperm.xlu0 %1223, %v1066
        %v1225 = vpop.permute.xlu0 %1224
        %1228 = vset.pattern.permute.xlu0 0
        %1229 = vperm.xlu0 %1228, %v1067
        %v1230 = vpop.permute.xlu0 %1229
        %1233 = vset.pattern.permute.xlu0 0
        %1234 = vperm.xlu0 %1233, %v1068
        %v1235 = vpop.permute.xlu0 %1234
        %1238 = vset.pattern.permute.xlu0 0
        %1239 = vperm.xlu0 %1238, %v1069
        %v1240 = vpop.permute.xlu0 %1239
        %1243 = vset.pattern.permute.xlu0 0
        %1244 = vperm.xlu0 %1243, %v1070
        %v1245 = vpop.permute.xlu0 %1244
        %1248 = vset.pattern.permute.xlu0 0
        %1249 = vperm.xlu0 %1248, %v1071
        %v1250 = vpop.permute.xlu0 %1249
        %1253 = vset.pattern.permute.xlu0 0
        %1254 = vperm.xlu0 %1253, %v1072
        %v1255 = vpop.permute.xlu0 %1254
        %1258 = vset.pattern.permute.xlu0 0
        %1259 = vperm.xlu0 %1258, %v1073
        %v1260 = vpop.permute.xlu0 %1259
        %1263 = vset.pattern.permute.xlu0 0
        %1264 = vperm.xlu0 %1263, %v1074
        %v1265 = vpop.permute.xlu0 %1264
        %1268 = vset.pattern.permute.xlu0 0
        %1269 = vperm.xlu0 %1268, %v1075
        %v1270 = vpop.permute.xlu0 %1269
        %1273 = vset.pattern.permute.xlu0 0
        %1274 = vperm.xlu0 %1273, %v1076
        %v1275 = vpop.permute.xlu0 %1274
        %v1277 = vadd.f32 %v957, %v1080
        %v1278 = vadd.f32 %v958, %v1080
        %v1279 = vadd.f32 %v959, %v1085
        %v1280 = vadd.f32 %v960, %v1085
        %v1281 = vadd.f32 %v961, %v1090
        %v1282 = vadd.f32 %v962, %v1090
        %v1283 = vadd.f32 %v963, %v1095
        %v1284 = vadd.f32 %v964, %v1095
        %v1285 = vadd.f32 %v965, %v1100
        %v1286 = vadd.f32 %v966, %v1100
        %v1287 = vadd.f32 %v967, %v1105
        %v1288 = vadd.f32 %v968, %v1105
        %v1289 = vadd.f32 %v969, %v1110
        %v1290 = vadd.f32 %v970, %v1110
        %v1291 = vadd.f32 %v971, %v1115
        %v1292 = vadd.f32 %v972, %v1115
        %v1293 = vadd.f32 %v973, %v1120
        %v1294 = vadd.f32 %v974, %v1120
        %v1295 = vadd.f32 %v975, %v1125
        %v1296 = vadd.f32 %v976, %v1125
        %v1297 = vadd.f32 %v977, %v1130
        %v1298 = vadd.f32 %v978, %v1130
        %v1299 = vadd.f32 %v979, %v1135
        %v1300 = vadd.f32 %v980, %v1135
        %v1301 = vadd.f32 %v981, %v1140
        %v1302 = vadd.f32 %v982, %v1140
        %v1303 = vadd.f32 %v983, %v1145
        %v1304 = vadd.f32 %v984, %v1145
        %v1305 = vadd.f32 %v985, %v1150
        %v1306 = vadd.f32 %v986, %v1150
        %v1307 = vadd.f32 %v987, %v1155
        %v1308 = vadd.f32 %v988, %v1155
        %v1309 = vadd.f32 %v989, %v1160
        %v1310 = vadd.f32 %v990, %v1160
        %v1311 = vadd.f32 %v991, %v1165
        %v1312 = vadd.f32 %v992, %v1165
        %v1313 = vadd.f32 %v993, %v1170
        %v1314 = vadd.f32 %v994, %v1170
        %v1315 = vadd.f32 %v995, %v1175
        %v1316 = vadd.f32 %v996, %v1175
        %v1317 = vadd.f32 %v997, %v1180
        %v1318 = vadd.f32 %v998, %v1180
        %v1319 = vadd.f32 %v999, %v1185
        %v1320 = vadd.f32 %v1000, %v1185
        %v1321 = vadd.f32 %v1001, %v1190
        %v1322 = vadd.f32 %v1002, %v1190
        %v1323 = vadd.f32 %v1003, %v1195
        %v1324 = vadd.f32 %v1004, %v1195
        %v1325 = vadd.f32 %v1005, %v1200
        %v1326 = vadd.f32 %v1006, %v1200
        %v1327 = vadd.f32 %v1007, %v1205
        %v1328 = vadd.f32 %v1008, %v1205
        %v1329 = vadd.f32 %v1009, %v1210
        %v1330 = vadd.f32 %v1010, %v1210
        %v1331 = vadd.f32 %v1011, %v1215
        %v1332 = vadd.f32 %v1012, %v1215
        %v1333 = vadd.f32 %v1013, %v1220
        %v1334 = vadd.f32 %v1014, %v1220
        %v1335 = vadd.f32 %v1015, %v1225
        %v1336 = vadd.f32 %v1016, %v1225
        %v1337 = vadd.f32 %v1017, %v1230
        %v1338 = vadd.f32 %v1018, %v1230
        %v1339 = vadd.f32 %v1019, %v1235
        %v1340 = vadd.f32 %v1020, %v1235
        %v1341 = vadd.f32 %v1021, %v1240
        %v1342 = vadd.f32 %v1022, %v1240
        %v1343 = vadd.f32 %v1023, %v1245
        %v1344 = vadd.f32 %v1024, %v1245
        %v1345 = vadd.f32 %v1025, %v1250
        %v1346 = vadd.f32 %v1026, %v1250
        %v1347 = vadd.f32 %v1027, %v1255
        %v1348 = vadd.f32 %v1028, %v1255
        %v1349 = vadd.f32 %v1029, %v1260
        %v1350 = vadd.f32 %v1030, %v1260
        %v1351 = vadd.f32 %v1031, %v1265
        %v1352 = vadd.f32 %v1032, %v1265
        %v1353 = vadd.f32 %v1033, %v1270
        %v1354 = vadd.f32 %v1034, %v1270
        %v1355 = vadd.f32 %v1035, %v1275
        %v1356 = vadd.f32 %v1036, %v1275
        %v1357 = vmax.f32 %v1277, 0.0
        %v1358 = vmax.f32 %v1278, 0.0
        %v1359 = vmax.f32 %v1279, 0.0
        %v1360 = vmax.f32 %v1280, 0.0
        %v1361 = vmax.f32 %v1281, 0.0
        %v1362 = vmax.f32 %v1282, 0.0
        %v1363 = vmax.f32 %v1283, 0.0
        %v1364 = vmax.f32 %v1284, 0.0
        %v1365 = vmax.f32 %v1285, 0.0
        %v1366 = vmax.f32 %v1286, 0.0
        %v1367 = vmax.f32 %v1287, 0.0
        %v1368 = vmax.f32 %v1288, 0.0
        %v1369 = vmax.f32 %v1289, 0.0
        %v1370 = vmax.f32 %v1290, 0.0
        %v1371 = vmax.f32 %v1291, 0.0
        %v1372 = vmax.f32 %v1292, 0.0
        %v1373 = vmax.f32 %v1293, 0.0
        %v1374 = vmax.f32 %v1294, 0.0
        %v1375 = vmax.f32 %v1295, 0.0
        %v1376 = vmax.f32 %v1296, 0.0
        %v1377 = vmax.f32 %v1297, 0.0
        %v1378 = vmax.f32 %v1298, 0.0
        %v1379 = vmax.f32 %v1299, 0.0
        %v1380 = vmax.f32 %v1300, 0.0
        %v1381 = vmax.f32 %v1301, 0.0
        %v1382 = vmax.f32 %v1302, 0.0
        %v1383 = vmax.f32 %v1303, 0.0
        %v1384 = vmax.f32 %v1304, 0.0
        %v1385 = vmax.f32 %v1305, 0.0
        %v1386 = vmax.f32 %v1306, 0.0
        %v1387 = vmax.f32 %v1307, 0.0
        %v1388 = vmax.f32 %v1308, 0.0
        %v1389 = vmax.f32 %v1309, 0.0
        %v1390 = vmax.f32 %v1310, 0.0
        %v1391 = vmax.f32 %v1311, 0.0
        %v1392 = vmax.f32 %v1312, 0.0
        %v1393 = vmax.f32 %v1313, 0.0
        %v1394 = vmax.f32 %v1314, 0.0
        %v1395 = vmax.f32 %v1315, 0.0
        %v1396 = vmax.f32 %v1316, 0.0
        %v1397 = vmax.f32 %v1317, 0.0
        %v1398 = vmax.f32 %v1318, 0.0
        %v1399 = vmax.f32 %v1319, 0.0
        %v1400 = vmax.f32 %v1320, 0.0
        %v1401 = vmax.f32 %v1321, 0.0
        %v1402 = vmax.f32 %v1322, 0.0
        %v1403 = vmax.f32 %v1323, 0.0
        %v1404 = vmax.f32 %v1324, 0.0
        %v1405 = vmax.f32 %v1325, 0.0
        %v1406 = vmax.f32 %v1326, 0.0
        %v1407 = vmax.f32 %v1327, 0.0
        %v1408 = vmax.f32 %v1328, 0.0
        %v1409 = vmax.f32 %v1329, 0.0
        %v1410 = vmax.f32 %v1330, 0.0
        %v1411 = vmax.f32 %v1331, 0.0
        %v1412 = vmax.f32 %v1332, 0.0
        %v1413 = vmax.f32 %v1333, 0.0
        %v1414 = vmax.f32 %v1334, 0.0
        %v1415 = vmax.f32 %v1335, 0.0
        %v1416 = vmax.f32 %v1336, 0.0
        %v1417 = vmax.f32 %v1337, 0.0
        %v1418 = vmax.f32 %v1338, 0.0
        %v1419 = vmax.f32 %v1339, 0.0
        %v1420 = vmax.f32 %v1340, 0.0
        %v1421 = vmax.f32 %v1341, 0.0
        %v1422 = vmax.f32 %v1342, 0.0
        %v1423 = vmax.f32 %v1343, 0.0
        %v1424 = vmax.f32 %v1344, 0.0
        %v1425 = vmax.f32 %v1345, 0.0
        %v1426 = vmax.f32 %v1346, 0.0
        %v1427 = vmax.f32 %v1347, 0.0
        %v1428 = vmax.f32 %v1348, 0.0
        %v1429 = vmax.f32 %v1349, 0.0
        %v1430 = vmax.f32 %v1350, 0.0
        %v1431 = vmax.f32 %v1351, 0.0
        %v1432 = vmax.f32 %v1352, 0.0
        %v1433 = vmax.f32 %v1353, 0.0
        %v1434 = vmax.f32 %v1354, 0.0
        %v1435 = vmax.f32 %v1355, 0.0
        %v1436 = vmax.f32 %v1356, 0.0
        %s1437 = smul.u32 %s23, 256
        %v1438 = vlaneseq
        %v1439 = vand.u32 %v1438, 127
        %v1440 = vadd.s32 %v1439, 128
        %v1441 = vstv %s1437
        %v1442 = vadd.s32 %v1441, %v1439
        %v1443 = vadd.s32 %v1441, %v1440
        %vm1444 = vcmp.lt.s32.totalorder %v1442, 512
        %vm1445 = vcmp.lt.s32.totalorder %v1443, 512
        %v1446 = vsel %vm1444, 1, 0
        %v1447 = vsel %vm1445, 1, 0
        %vm1448 = vcmp.eq.s32.totalorder %v1446, 1
        %vm1449 = vcmp.eq.s32.totalorder %v1447, 1
        %v1450 = vsel %vm1448, %v1357, 0.0
        %v1451 = vsel %vm1449, %v1358, 0.0
        %v1452 = vsel %vm1448, %v1359, 0.0
        %v1453 = vsel %vm1449, %v1360, 0.0
        %v1454 = vsel %vm1448, %v1361, 0.0
        %v1455 = vsel %vm1449, %v1362, 0.0
        %v1456 = vsel %vm1448, %v1363, 0.0
        %v1457 = vsel %vm1449, %v1364, 0.0
        %v1458 = vsel %vm1448, %v1365, 0.0
        %v1459 = vsel %vm1449, %v1366, 0.0
        %v1460 = vsel %vm1448, %v1367, 0.0
        %v1461 = vsel %vm1449, %v1368, 0.0
        %v1462 = vsel %vm1448, %v1369, 0.0
        %v1463 = vsel %vm1449, %v1370, 0.0
        %v1464 = vsel %vm1448, %v1371, 0.0
        %v1465 = vsel %vm1449, %v1372, 0.0
        %v1466 = vsel %vm1448, %v1373, 0.0
        %v1467 = vsel %vm1449, %v1374, 0.0
        %v1468 = vsel %vm1448, %v1375, 0.0
        %v1469 = vsel %vm1449, %v1376, 0.0
        %v1470 = vsel %vm1448, %v1377, 0.0
        %v1471 = vsel %vm1449, %v1378, 0.0
        %v1472 = vsel %vm1448, %v1379, 0.0
        %v1473 = vsel %vm1449, %v1380, 0.0
        %v1474 = vsel %vm1448, %v1381, 0.0
        %v1475 = vsel %vm1449, %v1382, 0.0
        %v1476 = vsel %vm1448, %v1383, 0.0
        %v1477 = vsel %vm1449, %v1384, 0.0
        %v1478 = vsel %vm1448, %v1385, 0.0
        %v1479 = vsel %vm1449, %v1386, 0.0
        %v1480 = vsel %vm1448, %v1387, 0.0
        %v1481 = vsel %vm1449, %v1388, 0.0
        %v1482 = vsel %vm1448, %v1389, 0.0
        %v1483 = vsel %vm1449, %v1390, 0.0
        %v1484 = vsel %vm1448, %v1391, 0.0
        %v1485 = vsel %vm1449, %v1392, 0.0
        %v1486 = vsel %vm1448, %v1393, 0.0
        %v1487 = vsel %vm1449, %v1394, 0.0
        %v1488 = vsel %vm1448, %v1395, 0.0
        %v1489 = vsel %vm1449, %v1396, 0.0
        %v1490 = vsel %vm1448, %v1397, 0.0
        %v1491 = vsel %vm1449, %v1398, 0.0
        %v1492 = vsel %vm1448, %v1399, 0.0
        %v1493 = vsel %vm1449, %v1400, 0.0
        %v1494 = vsel %vm1448, %v1401, 0.0
        %v1495 = vsel %vm1449, %v1402, 0.0
        %v1496 = vsel %vm1448, %v1403, 0.0
        %v1497 = vsel %vm1449, %v1404, 0.0
        %v1498 = vsel %vm1448, %v1405, 0.0
        %v1499 = vsel %vm1449, %v1406, 0.0
        %v1500 = vsel %vm1448, %v1407, 0.0
        %v1501 = vsel %vm1449, %v1408, 0.0
        %v1502 = vsel %vm1448, %v1409, 0.0
        %v1503 = vsel %vm1449, %v1410, 0.0
        %v1504 = vsel %vm1448, %v1411, 0.0
        %v1505 = vsel %vm1449, %v1412, 0.0
        %v1506 = vsel %vm1448, %v1413, 0.0
        %v1507 = vsel %vm1449, %v1414, 0.0
        %v1508 = vsel %vm1448, %v1415, 0.0
        %v1509 = vsel %vm1449, %v1416, 0.0
        %v1510 = vsel %vm1448, %v1417, 0.0
        %v1511 = vsel %vm1449, %v1418, 0.0
        %v1512 = vsel %vm1448, %v1419, 0.0
        %v1513 = vsel %vm1449, %v1420, 0.0
        %v1514 = vsel %vm1448, %v1421, 0.0
        %v1515 = vsel %vm1449, %v1422, 0.0
        %v1516 = vsel %vm1448, %v1423, 0.0
        %v1517 = vsel %vm1449, %v1424, 0.0
        %v1518 = vsel %vm1448, %v1425, 0.0
        %v1519 = vsel %vm1449, %v1426, 0.0
        %v1520 = vsel %vm1448, %v1427, 0.0
        %v1521 = vsel %vm1449, %v1428, 0.0
        %v1522 = vsel %vm1448, %v1429, 0.0
        %v1523 = vsel %vm1449, %v1430, 0.0
        %v1524 = vsel %vm1448, %v1431, 0.0
        %v1525 = vsel %vm1449, %v1432, 0.0
        %v1526 = vsel %vm1448, %v1433, 0.0
        %v1527 = vsel %vm1449, %v1434, 0.0
        %v1528 = vsel %vm1448, %v1435, 0.0
        %v1529 = vsel %vm1449, %v1436, 0.0
        %v1530 = vlaneseq
        %v1531 = vshrl.u32 %v1530, 7
        %v1532 = vadd.s32 %v1531, 8
        %v1533 = vadd.s32 %v1531, 16
        %v1534 = vadd.s32 %v1531, 24
        %v1535 = vadd.s32 %v1531, 32
        %v1536 = vadd.s32 %v1531, 40
        %v1537 = vadd.s32 %v1531, 48
        %v1538 = vadd.s32 %v1531, 56
        %v1539 = vadd.s32 %v1531, 64
        %v1540 = vadd.s32 %v1531, 72
        %v1541 = vadd.s32 %v1531, 80
        %v1542 = vadd.s32 %v1531, 88
        %v1543 = vadd.s32 %v1531, 96
        %v1544 = vadd.s32 %v1531, 104
        %v1545 = vadd.s32 %v1531, 112
        %v1546 = vadd.s32 %v1531, 120
        %v1547 = vadd.s32 %v1531, 128
        %v1548 = vadd.s32 %v1531, 136
        %v1549 = vadd.s32 %v1531, 144
        %v1550 = vadd.s32 %v1531, 152
        %v1551 = vadd.s32 %v1531, 160
        %v1552 = vadd.s32 %v1531, 168
        %v1553 = vadd.s32 %v1531, 176
        %v1554 = vadd.s32 %v1531, 184
        %v1555 = vadd.s32 %v1531, 192
        %v1556 = vadd.s32 %v1531, 200
        %v1557 = vadd.s32 %v1531, 208
        %v1558 = vadd.s32 %v1531, 216
        %v1559 = vadd.s32 %v1531, 224
        %v1560 = vadd.s32 %v1531, 232
        %v1561 = vadd.s32 %v1531, 240
        %v1562 = vadd.s32 %v1531, 248
        %v1563 = vmul.u32 %v1439, 2
        %vm1564 = vcmp.eq.s32.totalorder %v1531, %v1563
        %vm1565 = vcmp.eq.s32.totalorder %v1532, %v1563
        %vm1566 = vcmp.eq.s32.totalorder %v1533, %v1563
        %vm1567 = vcmp.eq.s32.totalorder %v1534, %v1563
        %vm1568 = vcmp.eq.s32.totalorder %v1535, %v1563
        %vm1569 = vcmp.eq.s32.totalorder %v1536, %v1563
        %vm1570 = vcmp.eq.s32.totalorder %v1537, %v1563
        %vm1571 = vcmp.eq.s32.totalorder %v1538, %v1563
        %vm1572 = vcmp.eq.s32.totalorder %v1539, %v1563
        %vm1573 = vcmp.eq.s32.totalorder %v1540, %v1563
        %vm1574 = vcmp.eq.s32.totalorder %v1541, %v1563
        %vm1575 = vcmp.eq.s32.totalorder %v1542, %v1563
        %vm1576 = vcmp.eq.s32.totalorder %v1543, %v1563
        %vm1577 = vcmp.eq.s32.totalorder %v1544, %v1563
        %vm1578 = vcmp.eq.s32.totalorder %v1545, %v1563
        %vm1579 = vcmp.eq.s32.totalorder %v1546, %v1563
        %vm1580 = vcmp.eq.s32.totalorder %v1547, %v1563
        %vm1581 = vcmp.eq.s32.totalorder %v1548, %v1563
        %vm1582 = vcmp.eq.s32.totalorder %v1549, %v1563
        %vm1583 = vcmp.eq.s32.totalorder %v1550, %v1563
        %vm1584 = vcmp.eq.s32.totalorder %v1551, %v1563
        %vm1585 = vcmp.eq.s32.totalorder %v1552, %v1563
        %vm1586 = vcmp.eq.s32.totalorder %v1553, %v1563
        %vm1587 = vcmp.eq.s32.totalorder %v1554, %v1563
        %vm1588 = vcmp.eq.s32.totalorder %v1555, %v1563
        %vm1589 = vcmp.eq.s32.totalorder %v1556, %v1563
        %vm1590 = vcmp.eq.s32.totalorder %v1557, %v1563
        %vm1591 = vcmp.eq.s32.totalorder %v1558, %v1563
        %vm1592 = vcmp.eq.s32.totalorder %v1559, %v1563
        %vm1593 = vcmp.eq.s32.totalorder %v1560, %v1563
        %vm1594 = vcmp.eq.s32.totalorder %v1561, %v1563
        %vm1595 = vcmp.eq.s32.totalorder %v1562, %v1563
        %v1596 = vsel %vm1564, 1, 0
        %v1597 = vsel %vm1565, 1, 0
        %v1598 = vsel %vm1566, 1, 0
        %v1599 = vsel %vm1567, 1, 0
        %v1600 = vsel %vm1568, 1, 0
        %v1601 = vsel %vm1569, 1, 0
        %v1602 = vsel %vm1570, 1, 0
        %v1603 = vsel %vm1571, 1, 0
        %v1604 = vsel %vm1572, 1, 0
        %v1605 = vsel %vm1573, 1, 0
        %v1606 = vsel %vm1574, 1, 0
        %v1607 = vsel %vm1575, 1, 0
        %v1608 = vsel %vm1576, 1, 0
        %v1609 = vsel %vm1577, 1, 0
        %v1610 = vsel %vm1578, 1, 0
        %v1611 = vsel %vm1579, 1, 0
        %v1612 = vsel %vm1580, 1, 0
        %v1613 = vsel %vm1581, 1, 0
        %v1614 = vsel %vm1582, 1, 0
        %v1615 = vsel %vm1583, 1, 0
        %v1616 = vsel %vm1584, 1, 0
        %v1617 = vsel %vm1585, 1, 0
        %v1618 = vsel %vm1586, 1, 0
        %v1619 = vsel %vm1587, 1, 0
        %v1620 = vsel %vm1588, 1, 0
        %v1621 = vsel %vm1589, 1, 0
        %v1622 = vsel %vm1590, 1, 0
        %v1623 = vsel %vm1591, 1, 0
        %v1624 = vsel %vm1592, 1, 0
        %v1625 = vsel %vm1593, 1, 0
        %v1626 = vsel %vm1594, 1, 0
        %v1627 = vsel %vm1595, 1, 0
        %v1628 = vcvt.s32.f32 %v1596
        %v1629 = vcvt.s32.f32 %v1597
        %v1630 = vcvt.s32.f32 %v1598
        %v1631 = vcvt.s32.f32 %v1599
        %v1632 = vcvt.s32.f32 %v1600
        %v1633 = vcvt.s32.f32 %v1601
        %v1634 = vcvt.s32.f32 %v1602
        %v1635 = vcvt.s32.f32 %v1603
        %v1636 = vcvt.s32.f32 %v1604
        %v1637 = vcvt.s32.f32 %v1605
        %v1638 = vcvt.s32.f32 %v1606
        %v1639 = vcvt.s32.f32 %v1607
        %v1640 = vcvt.s32.f32 %v1608
        %v1641 = vcvt.s32.f32 %v1609
        %v1642 = vcvt.s32.f32 %v1610
        %v1643 = vcvt.s32.f32 %v1611
        %v1644 = vcvt.s32.f32 %v1612
        %v1645 = vcvt.s32.f32 %v1613
        %v1646 = vcvt.s32.f32 %v1614
        %v1647 = vcvt.s32.f32 %v1615
        %v1648 = vcvt.s32.f32 %v1616
        %v1649 = vcvt.s32.f32 %v1617
        %v1650 = vcvt.s32.f32 %v1618
        %v1651 = vcvt.s32.f32 %v1619
        %v1652 = vcvt.s32.f32 %v1620
        %v1653 = vcvt.s32.f32 %v1621
        %v1654 = vcvt.s32.f32 %v1622
        %v1655 = vcvt.s32.f32 %v1623
        %v1656 = vcvt.s32.f32 %v1624
        %v1657 = vcvt.s32.f32 %v1625
        %v1658 = vcvt.s32.f32 %v1626
        %v1659 = vcvt.s32.f32 %v1627
        %v1660 = vadd.s32 %v1563, 1
        %vm1661 = vcmp.eq.s32.totalorder %v1531, %v1660
        %vm1662 = vcmp.eq.s32.totalorder %v1532, %v1660
        %vm1663 = vcmp.eq.s32.totalorder %v1533, %v1660
        %vm1664 = vcmp.eq.s32.totalorder %v1534, %v1660
        %vm1665 = vcmp.eq.s32.totalorder %v1535, %v1660
        %vm1666 = vcmp.eq.s32.totalorder %v1536, %v1660
        %vm1667 = vcmp.eq.s32.totalorder %v1537, %v1660
        %vm1668 = vcmp.eq.s32.totalorder %v1538, %v1660
        %vm1669 = vcmp.eq.s32.totalorder %v1539, %v1660
        %vm1670 = vcmp.eq.s32.totalorder %v1540, %v1660
        %vm1671 = vcmp.eq.s32.totalorder %v1541, %v1660
        %vm1672 = vcmp.eq.s32.totalorder %v1542, %v1660
        %vm1673 = vcmp.eq.s32.totalorder %v1543, %v1660
        %vm1674 = vcmp.eq.s32.totalorder %v1544, %v1660
        %vm1675 = vcmp.eq.s32.totalorder %v1545, %v1660
        %vm1676 = vcmp.eq.s32.totalorder %v1546, %v1660
        %vm1677 = vcmp.eq.s32.totalorder %v1547, %v1660
        %vm1678 = vcmp.eq.s32.totalorder %v1548, %v1660
        %vm1679 = vcmp.eq.s32.totalorder %v1549, %v1660
        %vm1680 = vcmp.eq.s32.totalorder %v1550, %v1660
        %vm1681 = vcmp.eq.s32.totalorder %v1551, %v1660
        %vm1682 = vcmp.eq.s32.totalorder %v1552, %v1660
        %vm1683 = vcmp.eq.s32.totalorder %v1553, %v1660
        %vm1684 = vcmp.eq.s32.totalorder %v1554, %v1660
        %vm1685 = vcmp.eq.s32.totalorder %v1555, %v1660
        %vm1686 = vcmp.eq.s32.totalorder %v1556, %v1660
        %vm1687 = vcmp.eq.s32.totalorder %v1557, %v1660
        %vm1688 = vcmp.eq.s32.totalorder %v1558, %v1660
        %vm1689 = vcmp.eq.s32.totalorder %v1559, %v1660
        %vm1690 = vcmp.eq.s32.totalorder %v1560, %v1660
        %vm1691 = vcmp.eq.s32.totalorder %v1561, %v1660
        %vm1692 = vcmp.eq.s32.totalorder %v1562, %v1660
        %v1693 = vsel %vm1661, 1, 0
        %v1694 = vsel %vm1662, 1, 0
        %v1695 = vsel %vm1663, 1, 0
        %v1696 = vsel %vm1664, 1, 0
        %v1697 = vsel %vm1665, 1, 0
        %v1698 = vsel %vm1666, 1, 0
        %v1699 = vsel %vm1667, 1, 0
        %v1700 = vsel %vm1668, 1, 0
        %v1701 = vsel %vm1669, 1, 0
        %v1702 = vsel %vm1670, 1, 0
        %v1703 = vsel %vm1671, 1, 0
        %v1704 = vsel %vm1672, 1, 0
        %v1705 = vsel %vm1673, 1, 0
        %v1706 = vsel %vm1674, 1, 0
        %v1707 = vsel %vm1675, 1, 0
        %v1708 = vsel %vm1676, 1, 0
        %v1709 = vsel %vm1677, 1, 0
        %v1710 = vsel %vm1678, 1, 0
        %v1711 = vsel %vm1679, 1, 0
        %v1712 = vsel %vm1680, 1, 0
        %v1713 = vsel %vm1681, 1, 0
        %v1714 = vsel %vm1682, 1, 0
        %v1715 = vsel %vm1683, 1, 0
        %v1716 = vsel %vm1684, 1, 0
        %v1717 = vsel %vm1685, 1, 0
        %v1718 = vsel %vm1686, 1, 0
        %v1719 = vsel %vm1687, 1, 0
        %v1720 = vsel %vm1688, 1, 0
        %v1721 = vsel %vm1689, 1, 0
        %v1722 = vsel %vm1690, 1, 0
        %v1723 = vsel %vm1691, 1, 0
        %v1724 = vsel %vm1692, 1, 0
        %v1725 = vcvt.s32.f32 %v1693
        %v1726 = vcvt.s32.f32 %v1694
        %v1727 = vcvt.s32.f32 %v1695
        %v1728 = vcvt.s32.f32 %v1696
        %v1729 = vcvt.s32.f32 %v1697
        %v1730 = vcvt.s32.f32 %v1698
        %v1731 = vcvt.s32.f32 %v1699
        %v1732 = vcvt.s32.f32 %v1700
        %v1733 = vcvt.s32.f32 %v1701
        %v1734 = vcvt.s32.f32 %v1702
        %v1735 = vcvt.s32.f32 %v1703
        %v1736 = vcvt.s32.f32 %v1704
        %v1737 = vcvt.s32.f32 %v1705
        %v1738 = vcvt.s32.f32 %v1706
        %v1739 = vcvt.s32.f32 %v1707
        %v1740 = vcvt.s32.f32 %v1708
        %v1741 = vcvt.s32.f32 %v1709
        %v1742 = vcvt.s32.f32 %v1710
        %v1743 = vcvt.s32.f32 %v1711
        %v1744 = vcvt.s32.f32 %v1712
        %v1745 = vcvt.s32.f32 %v1713
        %v1746 = vcvt.s32.f32 %v1714
        %v1747 = vcvt.s32.f32 %v1715
        %v1748 = vcvt.s32.f32 %v1716
        %v1749 = vcvt.s32.f32 %v1717
        %v1750 = vcvt.s32.f32 %v1718
        %v1751 = vcvt.s32.f32 %v1719
        %v1752 = vcvt.s32.f32 %v1720
        %v1753 = vcvt.s32.f32 %v1721
        %v1754 = vcvt.s32.f32 %v1722
        %v1755 = vcvt.s32.f32 %v1723
        %v1756 = vcvt.s32.f32 %v1724
        %1757 = vmatprep.subr.mxu0 0.0
        %1758 = vmatpush1.msra.mxu0 %v1628
        %1759 = vmatprep.subr.mxu0 0.0
        %1760 = vmatpush1.msra.mxu0 %v1629
        %1761 = vmatprep.subr.mxu0 0.0
        %1762 = vmatpush1.msra.mxu0 %v1630
        %1763 = vmatprep.subr.mxu0 0.0
        %1764 = vmatpush1.msra.mxu0 %v1631
        %1765 = vmatprep.subr.mxu0 0.0
        %1766 = vmatpush1.msra.mxu0 %v1632
        %1767 = vmatprep.subr.mxu0 0.0
        %1768 = vmatpush1.msra.mxu0 %v1633
        %1769 = vmatprep.subr.mxu0 0.0
        %1770 = vmatpush1.msra.mxu0 %v1634
        %1771 = vmatprep.subr.mxu0 0.0
        %1772 = vmatpush1.msra.mxu0 %v1635
        %1773 = vmatprep.subr.mxu0 0.0
        %1774 = vmatpush1.msra.mxu0 %v1636
        %1775 = vmatprep.subr.mxu0 0.0
        %1776 = vmatpush1.msra.mxu0 %v1637
        %1777 = vmatprep.subr.mxu0 0.0
        %1778 = vmatpush1.msra.mxu0 %v1638
        %1779 = vmatprep.subr.mxu0 0.0
        %1780 = vmatpush1.msra.mxu0 %v1639
        %1781 = vmatprep.subr.mxu0 0.0
        %1782 = vmatpush1.msra.mxu0 %v1640
        %1783 = vmatprep.subr.mxu0 0.0
        %1784 = vmatpush1.msra.mxu0 %v1641
        %1785 = vmatprep.subr.mxu0 0.0
        %1786 = vmatpush1.msra.mxu0 %v1642
        %1787 = vmatprep.subr.mxu0 0.0
        %1788 = vmatpush1.msra.mxu0 %v1643
        %1789 = vmatprep.subr.mxu0 0.0
        %1790 = vmatpush1.msra.mxu0 %v1644
        %1791 = vmatprep.subr.mxu0 0.0
        %1792 = vmatpush1.msra.mxu0 %v1645
        %1793 = vmatprep.subr.mxu0 0.0
        %1794 = vmatpush1.msra.mxu0 %v1646
        %1795 = vmatprep.subr.mxu0 0.0
        %1796 = vmatpush1.msra.mxu0 %v1647
        %1797 = vmatprep.subr.mxu0 0.0
        %1798 = vmatpush1.msra.mxu0 %v1648
        %1799 = vmatprep.subr.mxu0 0.0
        %1800 = vmatpush1.msra.mxu0 %v1649
        %1801 = vmatprep.subr.mxu0 0.0
        %1802 = vmatpush1.msra.mxu0 %v1650
        %1803 = vmatprep.subr.mxu0 0.0
        %1804 = vmatpush1.msra.mxu0 %v1651
        %1805 = vmatprep.subr.mxu0 0.0
        %1806 = vmatpush1.msra.mxu0 %v1652
        %1807 = vmatprep.subr.mxu0 0.0
        %1808 = vmatpush1.msra.mxu0 %v1653
        %1809 = vmatprep.subr.mxu0 0.0
        %1810 = vmatpush1.msra.mxu0 %v1654
        %1811 = vmatprep.subr.mxu0 0.0
        %1812 = vmatpush1.msra.mxu0 %v1655
        %1813 = vmatprep.subr.mxu0 0.0
        %1814 = vmatpush1.msra.mxu0 %v1656
        %1815 = vmatprep.subr.mxu0 0.0
        %1816 = vmatpush1.msra.mxu0 %v1657
        %1817 = vmatprep.subr.mxu0 0.0
        %1818 = vmatpush1.msra.mxu0 %v1658
        %1819 = vmatprep.subr.mxu0 0.0
        %1820 = vmatpush1.msra.mxu0 %v1659
        %1821 = vmatprep.mubr.f32.mxu0 %v1451
        %1822 = vmatmul.mubr.f32.gmra.mrb[0].mxu0 %v1450
        %v1823 = vpop.f32.mrb[0].mxu0
        %v1824 = vadd.f32 0.0, %v1823
        %v1825 = vpop.f32.mrb[0].mxu0
        %1826 = vmatprep.mubr.f32.mxu0 %v1453
        %1827 = vmatmul.mubr.f32.gmra.mrb[0].mxu0 %v1452
        %v1828 = vpop.f32.mrb[0].mxu0
        %v1829 = vadd.f32 0.0, %v1828
        %v1830 = vpop.f32.mrb[0].mxu0
        %1831 = vmatprep.mubr.f32.mxu0 %v1455
        %1832 = vmatmul.mubr.f32.gmra.mrb[0].mxu0 %v1454
        %v1833 = vpop.f32.mrb[0].mxu0
        %v1834 = vadd.f32 0.0, %v1833
        %v1835 = vpop.f32.mrb[0].mxu0
        %1836 = vmatprep.mubr.f32.mxu0 %v1457
        %1837 = vmatmul.mubr.f32.gmra.mrb[0].mxu0 %v1456
        %v1838 = vpop.f32.mrb[0].mxu0
        %v1839 = vadd.f32 0.0, %v1838
        %v1840 = vpop.f32.mrb[0].mxu0
        %1841 = vmatprep.mubr.f32.mxu0 %v1459
        %1842 = vmatmul.mubr.f32.gmra.mrb[0].mxu0 %v1458
        %v1843 = vpop.f32.mrb[0].mxu0
        %v1844 = vadd.f32 0.0, %v1843
        %v1845 = vpop.f32.mrb[0].mxu0
        %1846 = vmatprep.mubr.f32.mxu0 %v1461
        %1847 = vmatmul.mubr.f32.gmra.mrb[0].mxu0 %v1460
        %v1848 = vpop.f32.mrb[0].mxu0
        %v1849 = vadd.f32 0.0, %v1848
        %v1850 = vpop.f32.mrb[0].mxu0
        %1851 = vmatprep.mubr.f32.mxu0 %v1463
        %1852 = vmatmul.mubr.f32.gmra.mrb[0].mxu0 %v1462
        %v1853 = vpop.f32.mrb[0].mxu0
        %v1854 = vadd.f32 0.0, %v1853
        %v1855 = vpop.f32.mrb[0].mxu0
        %1856 = vmatprep.mubr.f32.mxu0 %v1465
        %1857 = vmatmul.mubr.f32.gmra.mrb[0].mxu0 %v1464
        %v1858 = vpop.f32.mrb[0].mxu0
        %v1859 = vadd.f32 0.0, %v1858
        %v1860 = vpop.f32.mrb[0].mxu0
        %1861 = vmatprep.mubr.f32.mxu0 %v1467
        %1862 = vmatmul.mubr.f32.gmra.mrb[0].mxu0 %v1466
        %v1863 = vpop.f32.mrb[0].mxu0
        %v1864 = vadd.f32 0.0, %v1863
        %v1865 = vpop.f32.mrb[0].mxu0
        %1866 = vmatprep.mubr.f32.mxu0 %v1469
        %1867 = vmatmul.mubr.f32.gmra.mrb[0].mxu0 %v1468
        %v1868 = vpop.f32.mrb[0].mxu0
        %v1869 = vadd.f32 0.0, %v1868
        %v1870 = vpop.f32.mrb[0].mxu0
        %1871 = vmatprep.mubr.f32.mxu0 %v1471
        %1872 = vmatmul.mubr.f32.gmra.mrb[0].mxu0 %v1470
        %v1873 = vpop.f32.mrb[0].mxu0
        %v1874 = vadd.f32 0.0, %v1873
        %v1875 = vpop.f32.mrb[0].mxu0
        %1876 = vmatprep.mubr.f32.mxu0 %v1473
        %1877 = vmatmul.mubr.f32.gmra.mrb[0].mxu0 %v1472
        %v1878 = vpop.f32.mrb[0].mxu0
        %v1879 = vadd.f32 0.0, %v1878
        %v1880 = vpop.f32.mrb[0].mxu0
        %1881 = vmatprep.mubr.f32.mxu0 %v1475
        %1882 = vmatmul.mubr.f32.gmra.mrb[0].mxu0 %v1474
        %v1883 = vpop.f32.mrb[0].mxu0
        %v1884 = vadd.f32 0.0, %v1883
        %v1885 = vpop.f32.mrb[0].mxu0
        %1886 = vmatprep.mubr.f32.mxu0 %v1477
        %1887 = vmatmul.mubr.f32.gmra.mrb[0].mxu0 %v1476
        %v1888 = vpop.f32.mrb[0].mxu0
        %v1889 = vadd.f32 0.0, %v1888
        %v1890 = vpop.f32.mrb[0].mxu0
        %1891 = vmatprep.mubr.f32.mxu0 %v1479
        %1892 = vmatmul.mubr.f32.gmra.mrb[0].mxu0 %v1478
        %v1893 = vpop.f32.mrb[0].mxu0
        %v1894 = vadd.f32 0.0, %v1893
        %v1895 = vpop.f32.mrb[0].mxu0
        %1896 = vmatprep.mubr.f32.mxu0 %v1481
        %1897 = vmatmul.mubr.f32.gmra.mrb[0].mxu0 %v1480
        %v1898 = vpop.f32.mrb[0].mxu0
        %v1899 = vadd.f32 0.0, %v1898
        %v1900 = vpop.f32.mrb[0].mxu0
        %1901 = vmatprep.mubr.f32.mxu0 %v1483
        %1902 = vmatmul.mubr.f32.gmra.mrb[0].mxu0 %v1482
        %v1903 = vpop.f32.mrb[0].mxu0
        %v1904 = vadd.f32 0.0, %v1903
        %v1905 = vpop.f32.mrb[0].mxu0
        %1906 = vmatprep.mubr.f32.mxu0 %v1485
        %1907 = vmatmul.mubr.f32.gmra.mrb[0].mxu0 %v1484
        %v1908 = vpop.f32.mrb[0].mxu0
        %v1909 = vadd.f32 0.0, %v1908
        %v1910 = vpop.f32.mrb[0].mxu0
        %1911 = vmatprep.mubr.f32.mxu0 %v1487
        %1912 = vmatmul.mubr.f32.gmra.mrb[0].mxu0 %v1486
        %v1913 = vpop.f32.mrb[0].mxu0
        %v1914 = vadd.f32 0.0, %v1913
        %v1915 = vpop.f32.mrb[0].mxu0
        %1916 = vmatprep.mubr.f32.mxu0 %v1489
        %1917 = vmatmul.mubr.f32.gmra.mrb[0].mxu0 %v1488
        %v1918 = vpop.f32.mrb[0].mxu0
        %v1919 = vadd.f32 0.0, %v1918
        %v1920 = vpop.f32.mrb[0].mxu0
        %1921 = vmatprep.mubr.f32.mxu0 %v1491
        %1922 = vmatmul.mubr.f32.gmra.mrb[0].mxu0 %v1490
        %v1923 = vpop.f32.mrb[0].mxu0
        %v1924 = vadd.f32 0.0, %v1923
        %v1925 = vpop.f32.mrb[0].mxu0
        %1926 = vmatprep.mubr.f32.mxu0 %v1493
        %1927 = vmatmul.mubr.f32.gmra.mrb[0].mxu0 %v1492
        %v1928 = vpop.f32.mrb[0].mxu0
        %v1929 = vadd.f32 0.0, %v1928
        %v1930 = vpop.f32.mrb[0].mxu0
        %1931 = vmatprep.mubr.f32.mxu0 %v1495
        %1932 = vmatmul.mubr.f32.gmra.mrb[0].mxu0 %v1494
        %v1933 = vpop.f32.mrb[0].mxu0
        %v1934 = vadd.f32 0.0, %v1933
        %v1935 = vpop.f32.mrb[0].mxu0
        %1936 = vmatprep.mubr.f32.mxu0 %v1497
        %1937 = vmatmul.mubr.f32.gmra.mrb[0].mxu0 %v1496
        %v1938 = vpop.f32.mrb[0].mxu0
        %v1939 = vadd.f32 0.0, %v1938
        %v1940 = vpop.f32.mrb[0].mxu0
        %1941 = vmatprep.mubr.f32.mxu0 %v1499
        %1942 = vmatmul.mubr.f32.gmra.mrb[0].mxu0 %v1498
        %v1943 = vpop.f32.mrb[0].mxu0
        %v1944 = vadd.f32 0.0, %v1943
        %v1945 = vpop.f32.mrb[0].mxu0
        %1946 = vmatprep.mubr.f32.mxu0 %v1501
        %1947 = vmatmul.mubr.f32.gmra.mrb[0].mxu0 %v1500
        %v1948 = vpop.f32.mrb[0].mxu0
        %v1949 = vadd.f32 0.0, %v1948
        %v1950 = vpop.f32.mrb[0].mxu0
        %1951 = vmatprep.mubr.f32.mxu0 %v1503
        %1952 = vmatmul.mubr.f32.gmra.mrb[0].mxu0 %v1502
        %v1953 = vpop.f32.mrb[0].mxu0
        %v1954 = vadd.f32 0.0, %v1953
        %v1955 = vpop.f32.mrb[0].mxu0
        %1956 = vmatprep.mubr.f32.mxu0 %v1505
        %1957 = vmatmul.mubr.f32.gmra.mrb[0].mxu0 %v1504
        %v1958 = vpop.f32.mrb[0].mxu0
        %v1959 = vadd.f32 0.0, %v1958
        %v1960 = vpop.f32.mrb[0].mxu0
        %1961 = vmatprep.mubr.f32.mxu0 %v1507
        %1962 = vmatmul.mubr.f32.gmra.mrb[0].mxu0 %v1506
        %v1963 = vpop.f32.mrb[0].mxu0
        %v1964 = vadd.f32 0.0, %v1963
        %v1965 = vpop.f32.mrb[0].mxu0
        %1966 = vmatprep.mubr.f32.mxu0 %v1509
        %1967 = vmatmul.mubr.f32.gmra.mrb[0].mxu0 %v1508
        %v1968 = vpop.f32.mrb[0].mxu0
        %v1969 = vadd.f32 0.0, %v1968
        %v1970 = vpop.f32.mrb[0].mxu0
        %1971 = vmatprep.mubr.f32.mxu0 %v1511
        %1972 = vmatmul.mubr.f32.gmra.mrb[0].mxu0 %v1510
        %v1973 = vpop.f32.mrb[0].mxu0
        %v1974 = vadd.f32 0.0, %v1973
        %v1975 = vpop.f32.mrb[0].mxu0
        %1976 = vmatprep.mubr.f32.mxu0 %v1513
        %1977 = vmatmul.mubr.f32.gmra.mrb[0].mxu0 %v1512
        %v1978 = vpop.f32.mrb[0].mxu0
        %v1979 = vadd.f32 0.0, %v1978
        %v1980 = vpop.f32.mrb[0].mxu0
        %1981 = vmatprep.mubr.f32.mxu0 %v1515
        %1982 = vmatmul.mubr.f32.gmra.mrb[0].mxu0 %v1514
        %v1983 = vpop.f32.mrb[0].mxu0
        %v1984 = vadd.f32 0.0, %v1983
        %v1985 = vpop.f32.mrb[0].mxu0
        %1986 = vmatprep.mubr.f32.mxu0 %v1517
        %1987 = vmatmul.mubr.f32.gmra.mrb[0].mxu0 %v1516
        %v1988 = vpop.f32.mrb[0].mxu0
        %v1989 = vadd.f32 0.0, %v1988
        %v1990 = vpop.f32.mrb[0].mxu0
        %1991 = vmatprep.mubr.f32.mxu0 %v1519
        %1992 = vmatmul.mubr.f32.gmra.mrb[0].mxu0 %v1518
        %v1993 = vpop.f32.mrb[0].mxu0
        %v1994 = vadd.f32 0.0, %v1993
        %v1995 = vpop.f32.mrb[0].mxu0
        %1996 = vmatprep.mubr.f32.mxu0 %v1521
        %1997 = vmatmul.mubr.f32.gmra.mrb[0].mxu0 %v1520
        %v1998 = vpop.f32.mrb[0].mxu0
        %v1999 = vadd.f32 0.0, %v1998
        %v2000 = vpop.f32.mrb[0].mxu0
        %2001 = vmatprep.mubr.f32.mxu0 %v1523
        %2002 = vmatmul.mubr.f32.gmra.mrb[0].mxu0 %v1522
        %v2003 = vpop.f32.mrb[0].mxu0
        %v2004 = vadd.f32 0.0, %v2003
        %v2005 = vpop.f32.mrb[0].mxu0
        %2006 = vmatprep.mubr.f32.mxu0 %v1525
        %2007 = vmatmul.mubr.f32.gmra.mrb[0].mxu0 %v1524
        %v2008 = vpop.f32.mrb[0].mxu0
        %v2009 = vadd.f32 0.0, %v2008
        %v2010 = vpop.f32.mrb[0].mxu0
        %2011 = vmatprep.mubr.f32.mxu0 %v1527
        %2012 = vmatmul.mubr.f32.gmra.mrb[0].mxu0 %v1526
        %v2013 = vpop.f32.mrb[0].mxu0
        %v2014 = vadd.f32 0.0, %v2013
        %v2015 = vpop.f32.mrb[0].mxu0
        %2016 = vmatprep.mubr.f32.mxu0 %v1529
        %2017 = vmatmul.mubr.f32.gmra.mrb[0].mxu0 %v1528
        %v2018 = vpop.f32.mrb[0].mxu0
        %v2019 = vadd.f32 0.0, %v2018
        %v2020 = vpop.f32.mrb[0].mxu0
        %2021 = vdwg.mxu0
        %2022 = vmatprep.subr.mxu0 0.0
        %2023 = vmatpush1.msra.mxu0 %v1725
        %2024 = vmatprep.subr.mxu0 0.0
        %2025 = vmatpush1.msra.mxu0 %v1726
        %2026 = vmatprep.subr.mxu0 0.0
        %2027 = vmatpush1.msra.mxu0 %v1727
        %2028 = vmatprep.subr.mxu0 0.0
        %2029 = vmatpush1.msra.mxu0 %v1728
        %2030 = vmatprep.subr.mxu0 0.0
        %2031 = vmatpush1.msra.mxu0 %v1729
        %2032 = vmatprep.subr.mxu0 0.0
        %2033 = vmatpush1.msra.mxu0 %v1730
        %2034 = vmatprep.subr.mxu0 0.0
        %2035 = vmatpush1.msra.mxu0 %v1731
        %2036 = vmatprep.subr.mxu0 0.0
        %2037 = vmatpush1.msra.mxu0 %v1732
        %2038 = vmatprep.subr.mxu0 0.0
        %2039 = vmatpush1.msra.mxu0 %v1733
        %2040 = vmatprep.subr.mxu0 0.0
        %2041 = vmatpush1.msra.mxu0 %v1734
        %2042 = vmatprep.subr.mxu0 0.0
        %2043 = vmatpush1.msra.mxu0 %v1735
        %2044 = vmatprep.subr.mxu0 0.0
        %2045 = vmatpush1.msra.mxu0 %v1736
        %2046 = vmatprep.subr.mxu0 0.0
        %2047 = vmatpush1.msra.mxu0 %v1737
        %2048 = vmatprep.subr.mxu0 0.0
        %2049 = vmatpush1.msra.mxu0 %v1738
        %2050 = vmatprep.subr.mxu0 0.0
        %2051 = vmatpush1.msra.mxu0 %v1739
        %2052 = vmatprep.subr.mxu0 0.0
        %2053 = vmatpush1.msra.mxu0 %v1740
        %2054 = vmatprep.subr.mxu0 0.0
        %2055 = vmatpush1.msra.mxu0 %v1741
        %2056 = vmatprep.subr.mxu0 0.0
        %2057 = vmatpush1.msra.mxu0 %v1742
        %2058 = vmatprep.subr.mxu0 0.0
        %2059 = vmatpush1.msra.mxu0 %v1743
        %2060 = vmatprep.subr.mxu0 0.0
        %2061 = vmatpush1.msra.mxu0 %v1744
        %2062 = vmatprep.subr.mxu0 0.0
        %2063 = vmatpush1.msra.mxu0 %v1745
        %2064 = vmatprep.subr.mxu0 0.0
        %2065 = vmatpush1.msra.mxu0 %v1746
        %2066 = vmatprep.subr.mxu0 0.0
        %2067 = vmatpush1.msra.mxu0 %v1747
        %2068 = vmatprep.subr.mxu0 0.0
        %2069 = vmatpush1.msra.mxu0 %v1748
        %2070 = vmatprep.subr.mxu0 0.0
        %2071 = vmatpush1.msra.mxu0 %v1749
        %2072 = vmatprep.subr.mxu0 0.0
        %2073 = vmatpush1.msra.mxu0 %v1750
        %2074 = vmatprep.subr.mxu0 0.0
        %2075 = vmatpush1.msra.mxu0 %v1751
        %2076 = vmatprep.subr.mxu0 0.0
        %2077 = vmatpush1.msra.mxu0 %v1752
        %2078 = vmatprep.subr.mxu0 0.0
        %2079 = vmatpush1.msra.mxu0 %v1753
        %2080 = vmatprep.subr.mxu0 0.0
        %2081 = vmatpush1.msra.mxu0 %v1754
        %2082 = vmatprep.subr.mxu0 0.0
        %2083 = vmatpush1.msra.mxu0 %v1755
        %2084 = vmatprep.subr.mxu0 0.0
        %2085 = vmatpush1.msra.mxu0 %v1756
        %2086 = vmatprep.mubr.f32.mxu0 %v1451
        %2087 = vmatmul.mubr.f32.gmra.mrb[0].mxu0 %v1450
        %v2088 = vpop.f32.mrb[0].mxu0
        %v2089 = vadd.f32 0.0, %v2088
        %v2090 = vpop.f32.mrb[0].mxu0
        %2091 = vmatprep.mubr.f32.mxu0 %v1453
        %2092 = vmatmul.mubr.f32.gmra.mrb[0].mxu0 %v1452
        %v2093 = vpop.f32.mrb[0].mxu0
        %v2094 = vadd.f32 0.0, %v2093
        %v2095 = vpop.f32.mrb[0].mxu0
        %2096 = vmatprep.mubr.f32.mxu0 %v1455
        %2097 = vmatmul.mubr.f32.gmra.mrb[0].mxu0 %v1454
        %v2098 = vpop.f32.mrb[0].mxu0
        %v2099 = vadd.f32 0.0, %v2098
        %v2100 = vpop.f32.mrb[0].mxu0
        %2101 = vmatprep.mubr.f32.mxu0 %v1457
        %2102 = vmatmul.mubr.f32.gmra.mrb[0].mxu0 %v1456
        %v2103 = vpop.f32.mrb[0].mxu0
        %v2104 = vadd.f32 0.0, %v2103
        %v2105 = vpop.f32.mrb[0].mxu0
        %2106 = vmatprep.mubr.f32.mxu0 %v1459
        %2107 = vmatmul.mubr.f32.gmra.mrb[0].mxu0 %v1458
        %v2108 = vpop.f32.mrb[0].mxu0
        %v2109 = vadd.f32 0.0, %v2108
        %v2110 = vpop.f32.mrb[0].mxu0
        %2111 = vmatprep.mubr.f32.mxu0 %v1461
        %2112 = vmatmul.mubr.f32.gmra.mrb[0].mxu0 %v1460
        %v2113 = vpop.f32.mrb[0].mxu0
        %v2114 = vadd.f32 0.0, %v2113
        %v2115 = vpop.f32.mrb[0].mxu0
        %2116 = vmatprep.mubr.f32.mxu0 %v1463
        %2117 = vmatmul.mubr.f32.gmra.mrb[0].mxu0 %v1462
        %v2118 = vpop.f32.mrb[0].mxu0
        %v2119 = vadd.f32 0.0, %v2118
        %v2120 = vpop.f32.mrb[0].mxu0
        %2121 = vmatprep.mubr.f32.mxu0 %v1465
        %2122 = vmatmul.mubr.f32.gmra.mrb[0].mxu0 %v1464
        %v2123 = vpop.f32.mrb[0].mxu0
        %v2124 = vadd.f32 0.0, %v2123
        %v2125 = vpop.f32.mrb[0].mxu0
        %2126 = vmatprep.mubr.f32.mxu0 %v1467
        %2127 = vmatmul.mubr.f32.gmra.mrb[0].mxu0 %v1466
        %v2128 = vpop.f32.mrb[0].mxu0
        %v2129 = vadd.f32 0.0, %v2128
        %v2130 = vpop.f32.mrb[0].mxu0
        %2131 = vmatprep.mubr.f32.mxu0 %v1469
        %2132 = vmatmul.mubr.f32.gmra.mrb[0].mxu0 %v1468
        %v2133 = vpop.f32.mrb[0].mxu0
        %v2134 = vadd.f32 0.0, %v2133
        %v2135 = vpop.f32.mrb[0].mxu0
        %2136 = vmatprep.mubr.f32.mxu0 %v1471
        %2137 = vmatmul.mubr.f32.gmra.mrb[0].mxu0 %v1470
        %v2138 = vpop.f32.mrb[0].mxu0
        %v2139 = vadd.f32 0.0, %v2138
        %v2140 = vpop.f32.mrb[0].mxu0
        %2141 = vmatprep.mubr.f32.mxu0 %v1473
        %2142 = vmatmul.mubr.f32.gmra.mrb[0].mxu0 %v1472
        %v2143 = vpop.f32.mrb[0].mxu0
        %v2144 = vadd.f32 0.0, %v2143
        %v2145 = vpop.f32.mrb[0].mxu0
        %2146 = vmatprep.mubr.f32.mxu0 %v1475
        %2147 = vmatmul.mubr.f32.gmra.mrb[0].mxu0 %v1474
        %v2148 = vpop.f32.mrb[0].mxu0
        %v2149 = vadd.f32 0.0, %v2148
        %v2150 = vpop.f32.mrb[0].mxu0
        %2151 = vmatprep.mubr.f32.mxu0 %v1477
        %2152 = vmatmul.mubr.f32.gmra.mrb[0].mxu0 %v1476
        %v2153 = vpop.f32.mrb[0].mxu0
        %v2154 = vadd.f32 0.0, %v2153
        %v2155 = vpop.f32.mrb[0].mxu0
        %2156 = vmatprep.mubr.f32.mxu0 %v1479
        %2157 = vmatmul.mubr.f32.gmra.mrb[0].mxu0 %v1478
        %v2158 = vpop.f32.mrb[0].mxu0
        %v2159 = vadd.f32 0.0, %v2158
        %v2160 = vpop.f32.mrb[0].mxu0
        %2161 = vmatprep.mubr.f32.mxu0 %v1481
        %2162 = vmatmul.mubr.f32.gmra.mrb[0].mxu0 %v1480
        %v2163 = vpop.f32.mrb[0].mxu0
        %v2164 = vadd.f32 0.0, %v2163
        %v2165 = vpop.f32.mrb[0].mxu0
        %2166 = vmatprep.mubr.f32.mxu0 %v1483
        %2167 = vmatmul.mubr.f32.gmra.mrb[0].mxu0 %v1482
        %v2168 = vpop.f32.mrb[0].mxu0
        %v2169 = vadd.f32 0.0, %v2168
        %v2170 = vpop.f32.mrb[0].mxu0
        %2171 = vmatprep.mubr.f32.mxu0 %v1485
        %2172 = vmatmul.mubr.f32.gmra.mrb[0].mxu0 %v1484
        %v2173 = vpop.f32.mrb[0].mxu0
        %v2174 = vadd.f32 0.0, %v2173
        %v2175 = vpop.f32.mrb[0].mxu0
        %2176 = vmatprep.mubr.f32.mxu0 %v1487
        %2177 = vmatmul.mubr.f32.gmra.mrb[0].mxu0 %v1486
        %v2178 = vpop.f32.mrb[0].mxu0
        %v2179 = vadd.f32 0.0, %v2178
        %v2180 = vpop.f32.mrb[0].mxu0
        %2181 = vmatprep.mubr.f32.mxu0 %v1489
        %2182 = vmatmul.mubr.f32.gmra.mrb[0].mxu0 %v1488
        %v2183 = vpop.f32.mrb[0].mxu0
        %v2184 = vadd.f32 0.0, %v2183
        %v2185 = vpop.f32.mrb[0].mxu0
        %2186 = vmatprep.mubr.f32.mxu0 %v1491
        %2187 = vmatmul.mubr.f32.gmra.mrb[0].mxu0 %v1490
        %v2188 = vpop.f32.mrb[0].mxu0
        %v2189 = vadd.f32 0.0, %v2188
        %v2190 = vpop.f32.mrb[0].mxu0
        %2191 = vmatprep.mubr.f32.mxu0 %v1493
        %2192 = vmatmul.mubr.f32.gmra.mrb[0].mxu0 %v1492
        %v2193 = vpop.f32.mrb[0].mxu0
        %v2194 = vadd.f32 0.0, %v2193
        %v2195 = vpop.f32.mrb[0].mxu0
        %2196 = vmatprep.mubr.f32.mxu0 %v1495
        %2197 = vmatmul.mubr.f32.gmra.mrb[0].mxu0 %v1494
        %v2198 = vpop.f32.mrb[0].mxu0
        %v2199 = vadd.f32 0.0, %v2198
        %v2200 = vpop.f32.mrb[0].mxu0
        %2201 = vmatprep.mubr.f32.mxu0 %v1497
        %2202 = vmatmul.mubr.f32.gmra.mrb[0].mxu0 %v1496
        %v2203 = vpop.f32.mrb[0].mxu0
        %v2204 = vadd.f32 0.0, %v2203
        %v2205 = vpop.f32.mrb[0].mxu0
        %2206 = vmatprep.mubr.f32.mxu0 %v1499
        %2207 = vmatmul.mubr.f32.gmra.mrb[0].mxu0 %v1498
        %v2208 = vpop.f32.mrb[0].mxu0
        %v2209 = vadd.f32 0.0, %v2208
        %v2210 = vpop.f32.mrb[0].mxu0
        %2211 = vmatprep.mubr.f32.mxu0 %v1501
        %2212 = vmatmul.mubr.f32.gmra.mrb[0].mxu0 %v1500
        %v2213 = vpop.f32.mrb[0].mxu0
        %v2214 = vadd.f32 0.0, %v2213
        %v2215 = vpop.f32.mrb[0].mxu0
        %2216 = vmatprep.mubr.f32.mxu0 %v1503
        %2217 = vmatmul.mubr.f32.gmra.mrb[0].mxu0 %v1502
        %v2218 = vpop.f32.mrb[0].mxu0
        %v2219 = vadd.f32 0.0, %v2218
        %v2220 = vpop.f32.mrb[0].mxu0
        %2221 = vmatprep.mubr.f32.mxu0 %v1505
        %2222 = vmatmul.mubr.f32.gmra.mrb[0].mxu0 %v1504
        %v2223 = vpop.f32.mrb[0].mxu0
        %v2224 = vadd.f32 0.0, %v2223
        %v2225 = vpop.f32.mrb[0].mxu0
        %2226 = vmatprep.mubr.f32.mxu0 %v1507
        %2227 = vmatmul.mubr.f32.gmra.mrb[0].mxu0 %v1506
        %v2228 = vpop.f32.mrb[0].mxu0
        %v2229 = vadd.f32 0.0, %v2228
        %v2230 = vpop.f32.mrb[0].mxu0
        %2231 = vmatprep.mubr.f32.mxu0 %v1509
        %2232 = vmatmul.mubr.f32.gmra.mrb[0].mxu0 %v1508
        %v2233 = vpop.f32.mrb[0].mxu0
        %v2234 = vadd.f32 0.0, %v2233
        %v2235 = vpop.f32.mrb[0].mxu0
        %2236 = vmatprep.mubr.f32.mxu0 %v1511
        %2237 = vmatmul.mubr.f32.gmra.mrb[0].mxu0 %v1510
        %v2238 = vpop.f32.mrb[0].mxu0
        %v2239 = vadd.f32 0.0, %v2238
        %v2240 = vpop.f32.mrb[0].mxu0
        %2241 = vmatprep.mubr.f32.mxu0 %v1513
        %2242 = vmatmul.mubr.f32.gmra.mrb[0].mxu0 %v1512
        %v2243 = vpop.f32.mrb[0].mxu0
        %v2244 = vadd.f32 0.0, %v2243
        %v2245 = vpop.f32.mrb[0].mxu0
        %2246 = vmatprep.mubr.f32.mxu0 %v1515
        %2247 = vmatmul.mubr.f32.gmra.mrb[0].mxu0 %v1514
        %v2248 = vpop.f32.mrb[0].mxu0
        %v2249 = vadd.f32 0.0, %v2248
        %v2250 = vpop.f32.mrb[0].mxu0
        %2251 = vmatprep.mubr.f32.mxu0 %v1517
        %2252 = vmatmul.mubr.f32.gmra.mrb[0].mxu0 %v1516
        %v2253 = vpop.f32.mrb[0].mxu0
        %v2254 = vadd.f32 0.0, %v2253
        %v2255 = vpop.f32.mrb[0].mxu0
        %2256 = vmatprep.mubr.f32.mxu0 %v1519
        %2257 = vmatmul.mubr.f32.gmra.mrb[0].mxu0 %v1518
        %v2258 = vpop.f32.mrb[0].mxu0
        %v2259 = vadd.f32 0.0, %v2258
        %v2260 = vpop.f32.mrb[0].mxu0
        %2261 = vmatprep.mubr.f32.mxu0 %v1521
        %2262 = vmatmul.mubr.f32.gmra.mrb[0].mxu0 %v1520
        %v2263 = vpop.f32.mrb[0].mxu0
        %v2264 = vadd.f32 0.0, %v2263
        %v2265 = vpop.f32.mrb[0].mxu0
        %2266 = vmatprep.mubr.f32.mxu0 %v1523
        %2267 = vmatmul.mubr.f32.gmra.mrb[0].mxu0 %v1522
        %v2268 = vpop.f32.mrb[0].mxu0
        %v2269 = vadd.f32 0.0, %v2268
        %v2270 = vpop.f32.mrb[0].mxu0
        %2271 = vmatprep.mubr.f32.mxu0 %v1525
        %2272 = vmatmul.mubr.f32.gmra.mrb[0].mxu0 %v1524
        %v2273 = vpop.f32.mrb[0].mxu0
        %v2274 = vadd.f32 0.0, %v2273
        %v2275 = vpop.f32.mrb[0].mxu0
        %2276 = vmatprep.mubr.f32.mxu0 %v1527
        %2277 = vmatmul.mubr.f32.gmra.mrb[0].mxu0 %v1526
        %v2278 = vpop.f32.mrb[0].mxu0
        %v2279 = vadd.f32 0.0, %v2278
        %v2280 = vpop.f32.mrb[0].mxu0
        %2281 = vmatprep.mubr.f32.mxu0 %v1529
        %2282 = vmatmul.mubr.f32.gmra.mrb[0].mxu0 %v1528
        %v2283 = vpop.f32.mrb[0].mxu0
        %v2284 = vadd.f32 0.0, %v2283
        %v2285 = vpop.f32.mrb[0].mxu0
        %2286 = vdwg.mxu0
        %v2287 = vmax.f32 %v1824, %v2089
        %v2288 = vmax.f32 %v1829, %v2094
        %v2289 = vmax.f32 %v1834, %v2099
        %v2290 = vmax.f32 %v1839, %v2104
        %v2291 = vmax.f32 %v1844, %v2109
        %v2292 = vmax.f32 %v1849, %v2114
        %v2293 = vmax.f32 %v1854, %v2119
        %v2294 = vmax.f32 %v1859, %v2124
        %v2295 = vmax.f32 %v1864, %v2129
        %v2296 = vmax.f32 %v1869, %v2134
        %v2297 = vmax.f32 %v1874, %v2139
        %v2298 = vmax.f32 %v1879, %v2144
        %v2299 = vmax.f32 %v1884, %v2149
        %v2300 = vmax.f32 %v1889, %v2154
        %v2301 = vmax.f32 %v1894, %v2159
        %v2302 = vmax.f32 %v1899, %v2164
        %v2303 = vmax.f32 %v1904, %v2169
        %v2304 = vmax.f32 %v1909, %v2174
        %v2305 = vmax.f32 %v1914, %v2179
        %v2306 = vmax.f32 %v1919, %v2184
        %v2307 = vmax.f32 %v1924, %v2189
        %v2308 = vmax.f32 %v1929, %v2194
        %v2309 = vmax.f32 %v1934, %v2199
        %v2310 = vmax.f32 %v1939, %v2204
        %v2311 = vmax.f32 %v1944, %v2209
        %v2312 = vmax.f32 %v1949, %v2214
        %v2313 = vmax.f32 %v1954, %v2219
        %v2314 = vmax.f32 %v1959, %v2224
        %v2315 = vmax.f32 %v1964, %v2229
        %v2316 = vmax.f32 %v1969, %v2234
        %v2317 = vmax.f32 %v1974, %v2239
        %v2318 = vmax.f32 %v1979, %v2244
        %v2319 = vmax.f32 %v1984, %v2249
        %v2320 = vmax.f32 %v1989, %v2254
        %v2321 = vmax.f32 %v1994, %v2259
        %v2322 = vmax.f32 %v1999, %v2264
        %v2323 = vmax.f32 %v2004, %v2269
        %v2324 = vmax.f32 %v2009, %v2274
        %v2325 = vmax.f32 %v2014, %v2279
        %v2326 = vmax.f32 %v2019, %v2284
        %2327 = vst [vmem:[%s243] sm:$0xff] %v2287
        %2328 = vst [vmem:[%s243 + $0x8] sm:$0xff] %v2288
        %2329 = vst [vmem:[%s243 + $0x10] sm:$0xff] %v2289
        %2330 = vst [vmem:[%s243 + $0x18] sm:$0xff] %v2290
        %2331 = vst [vmem:[%s243 + $0x20] sm:$0xff] %v2291
        %2332 = vst [vmem:[%s243 + $0x28] sm:$0xff] %v2292
        %2333 = vst [vmem:[%s243 + $0x30] sm:$0xff] %v2293
        %2334 = vst [vmem:[%s243 + $0x38] sm:$0xff] %v2294
        %2335 = vst [vmem:[%s243 + $0x40] sm:$0xff] %v2295
        %2336 = vst [vmem:[%s243 + $0x48] sm:$0xff] %v2296
        %2337 = vst [vmem:[%s243 + $0x50] sm:$0xff] %v2297
        %2338 = vst [vmem:[%s243 + $0x58] sm:$0xff] %v2298
        %2339 = vst [vmem:[%s243 + $0x60] sm:$0xff] %v2299
        %2340 = vst [vmem:[%s243 + $0x68] sm:$0xff] %v2300
        %2341 = vst [vmem:[%s243 + $0x70] sm:$0xff] %v2301
        %2342 = vst [vmem:[%s243 + $0x78] sm:$0xff] %v2302
        %2343 = vst [vmem:[%s243 + $0x80] sm:$0xff] %v2303
        %2344 = vst [vmem:[%s243 + $0x88] sm:$0xff] %v2304
        %2345 = vst [vmem:[%s243 + $0x90] sm:$0xff] %v2305
        %2346 = vst [vmem:[%s243 + $0x98] sm:$0xff] %v2306
        %2347 = vst [vmem:[%s243 + $0xa0] sm:$0xff] %v2307
        %2348 = vst [vmem:[%s243 + $0xa8] sm:$0xff] %v2308
        %2349 = vst [vmem:[%s243 + $0xb0] sm:$0xff] %v2309
        %2350 = vst [vmem:[%s243 + $0xb8] sm:$0xff] %v2310
        %2351 = vst [vmem:[%s243 + $0xc0] sm:$0xff] %v2311
        %2352 = vst [vmem:[%s243 + $0xc8] sm:$0xff] %v2312
        %2353 = vst [vmem:[%s243 + $0xd0] sm:$0xff] %v2313
        %2354 = vst [vmem:[%s243 + $0xd8] sm:$0xff] %v2314
        %2355 = vst [vmem:[%s243 + $0xe0] sm:$0xff] %v2315
        %2356 = vst [vmem:[%s243 + $0xe8] sm:$0xff] %v2316
        %2357 = vst [vmem:[%s243 + $0xf0] sm:$0xff] %v2317
        %2358 = vst [vmem:[%s243 + $0xf8] sm:$0xff] %v2318
        %2359 = vst [vmem:[%s243 + $0x100] sm:$0xff] %v2319
        %2360 = vst [vmem:[%s243 + $0x108] sm:$0xff] %v2320
        %2361 = vst [vmem:[%s243 + $0x110] sm:$0xff] %v2321
        %2362 = vst [vmem:[%s243 + $0x118] sm:$0xff] %v2322
        %2363 = vst [vmem:[%s243 + $0x120] sm:$0xff] %v2323
        %2364 = vst [vmem:[%s243 + $0x128] sm:$0xff] %v2324
        %2365 = vst [vmem:[%s243 + $0x130] sm:$0xff] %v2325
        %2366 = vst [vmem:[%s243 + $0x138] sm:$0xff] %v2326
        %s2367 = sand.u32 %s131, 1
        %s2368 = scalar_lea.sflag [#allocation4], %s2367
        %s2369 = sand.u32 %s131, 1
        %s2370 = smul.addr %s2369, 320
        %s2371 = scalar_lea.vmem [#allocation3], %s2370
        // Predicated region
        $region60: #{tpu_custom_call.1} parent=54 // pred_check
          %p2372 = pneg %p141
        $region61: #{tpu_custom_call.1} parent=54 // pred_check_branch
          %2374 = sbr.rel (%p2372) target = $region63
        $region62: #{tpu_custom_call.1} parent=54 // pred_region
          %s2376 = ssub.s32 5120, 5120
          %2377 = vsyncadd %s2368, %s2376
          %s2378 = smul.addr %s22, 80
          %s2379 = sadd.s32 %s23, %s2378
          %s2380 = smul.addr %s2379, 128
          %s2381 = scalar_lea.hbm %s4, %s2380
          %s2382 = sshll.u32 %s2371, 4
          %s2383 = int_to_ptr.vmem [resolvable:$true] %s2382
          %2388 = dma.vmem_to_hbm [thread:$0]  %s2383, 5120, %s2381, %s2368, 128, 256, 8
        $region63: #{tpu_custom_call.1} parent=54 // pred_fallthru
          _
      $region55: #{tpu_custom_call.1} parent=5 // pred_fallthru
        _
      %p2389 = scmp.le.s32.totalorder 2, %s13
      // Predicated region
      $region64: #{tpu_custom_call.1} parent=5 // pred_check
        %p2390 = pneg %p2389
      $region65: #{tpu_custom_call.1} parent=5 // pred_check_branch
        %2392 = sbr.rel (%p2390) target = $region67
      $region66: #{tpu_custom_call.1} parent=5 // pred_region
        %s2393 = ssub.s32 %s13, 2
        // Predicated region
        $region68: #{tpu_custom_call.1} parent=66 // pred_check
          %p2394 = pneg %p147
        $region69: #{tpu_custom_call.1} parent=66 // pred_check_branch
          %2396 = sbr.rel (%p2394) target = $region71
        $region70: #{tpu_custom_call.1} parent=66 // pred_region
          %s2397 = sand.u32 %s132, 1
          %s2398 = scalar_lea.sflag [#allocation4], %s2397
          %s2399 = sand.u32 %s132, 1
          %s2400 = smul.addr %s2399, 320
          %s2401 = scalar_lea.vmem [#allocation3], %s2400
          %2402 = dma.done %s2398, 5120
        $region71: #{tpu_custom_call.1} parent=66 // pred_fallthru
          _
      $region67: #{tpu_custom_call.1} parent=5 // pred_fallthru
        _
    $region6: #{tpu_custom_call.1} parent=1 // loop_footer
      %s17 = sadd.s32 1, %s13
    $region7: #{tpu_custom_call.1} parent=1 // loop_footer_branch
      %12 = sbr.rel target = $region3
    $region8: #{tpu_custom_call.1} parent=1 // loop_exit
      _
    %2403 = vsyncpa [#allocation4], 1
    %s2404 = scalar_lea.sflag [#allocation4], 1
    %2405 = vsyncpa %s2404, 1

</llo_original>
